<compile_context>
chip_gen: v7x
topology: tpu7x:2x2x1
jax: 0.10.0
libtpu: 0.0.40
codegen_flags: <defaults>
</compile_context>

<pallas_src>
import jax
import jax.numpy as jnp
from jax import lax
from jax.experimental import pallas as pl
from jax.experimental.pallas import tpu as pltpu


def _round_up(x, m):
    return (x + m - 1) // m * m


def _num_tensorcores():
    """Best-effort TensorCore count of the local chip (v7x=2, v5e/v6e=1)."""
    try:
        info = pltpu.get_tpu_info()
        for attr in ("num_cores", "num_tensorcores", "tensorcore_count",
                     "cores_per_chip", "core_count"):
            v = getattr(info, attr, None)
            if isinstance(v, int) and v > 0:
                return v
    except Exception:
        pass
    try:
        v = getattr(jax.devices()[0], "num_cores", None)
        if isinstance(v, int) and v > 0:
            return v
    except Exception:
        pass
    return 1


def _gru_fused_kernel(x_ref, wih_ref, bias_ref, whh_ref, bhn_ref, o_ref, h_ref):
    """Runs TT GRU timesteps for one (batch block, time block) grid step.

    x_ref   : (TT, BB, I)   raw time-major inputs for this block.
    wih_ref : (I, 3*Hp)     W_ih^T, gate-major lane-padded layout [r | z | n].
    bias_ref: (1, 3*Hp)     b_ih (all gates) + b_hh (r, z gates), padded.
    whh_ref : (Hp, 3*Hp)    W_hh^T; rows >= H and per-gate pad lanes are zero.
    bhn_ref : (1, Hp)       b_hh of the n gate (must stay inside r * (...)).
    o_ref   : (TT, BB, Hp)  hidden-state outputs for this block.
    h_ref   : (BB, Hp)      VMEM scratch: hidden carry across time blocks.

    NOTE: correctness of the carry requires the TIME axis to be the innermost
    (fastest-varying) grid axis, so h_ref is re-zeroed (t_blk == 0) before a
    new batch block starts.  Do not reorder the grid.
    """
    t_blk = pl.program_id(1)

    @pl.when(t_blk == 0)
    def _():
        # PyTorch default initial hidden state h_0 = zeros.
        h_ref[...] = jnp.zeros_like(h_ref)

    TT = x_ref.shape[0]
    BB, Hp = h_ref.shape

    # Hoisted broadcasts (JAX does not CSE broadcast_in_dim inside the loop).
    bias = jnp.broadcast_to(bias_ref[...], (BB, 3 * Hp))
    bhn = jnp.broadcast_to(bhn_ref[...], (BB, Hp))

    def step(s, h):
        # Fused input projection.  It does not depend on h, so it sits off the
        # serial dependency chain and overlaps with previous-step gate math.
        gi = jnp.dot(x_ref[s], wih_ref[...],
                     preferred_element_type=jnp.float32) + bias       # (BB, 3Hp)
        # Stream W_hh^T from VMEM instead of pinning 48 vregs across the loop.
        gh = jnp.dot(h, whh_ref[...],
                     preferred_element_type=jnp.float32)              # (BB, 3Hp)
        # Gate slots are Hp-wide and 128-lane aligned -> free splits.
        r = jax.nn.sigmoid(gi[:, 0:Hp] + gh[:, 0:Hp])
        z = jax.nn.sigmoid(gi[:, Hp:2 * Hp] + gh[:, Hp:2 * Hp])
        n = jnp.tanh(gi[:, 2 * Hp:3 * Hp] + r * (gh[:, 2 * Hp:3 * Hp] + bhn))
        h_new = n + z * (h - n)          # == (1 - z) * n + z * h, one fewer op
        o_ref[s] = h_new.astype(o_ref.dtype)
        return h_new

    h_final = lax.fori_loop(0, TT, step, h_ref[...], unroll=min(8, TT))
    h_ref[...] = h_final


def gru_decoder_forward(x, w_ih, w_hh, b_ih, b_hh, *,
                        time_block=None, batch_blocks=None):
    """GRU forward (num_layers=1, batch_first=True), returns full output sequence.

    x:    (B, T, I) float
    w_ih: (3H, I)   PyTorch layout (gates r, z, n stacked)
    w_hh: (3H, H)
    b_ih: (3H,)
    b_hh: (3H,)
    returns: (B, T, H) float32
    """
    B, T, I = x.shape
    H = w_ih.shape[0] // 3
    Hp = _round_up(H, 128)            # each gate gets a lane-aligned Hp-wide slot

    # Time blocking: big blocks amortize ~0.35us/grid-step pipeline overhead.
    TT = time_block if time_block is not None else min(T, 64)
    T_pad = _round_up(T, TT)
    n_t = T_pad // TT

    # Batch blocking: only useful when the chip has >1 TensorCore (v7x); the
    # block second-minor dim must stay a multiple of 8.
    if batch_blocks is None:
        batch_blocks = 2 if _num_tensorcores() >= 2 else 1
    if batch_blocks > 1 and B % (8 * batch_blocks) == 0:
        n_b = batch_blocks
    else:
        n_b = 1
    BB = B // n_b

    f32 = jnp.float32
    w_ih = jnp.asarray(w_ih, f32)
    w_hh = jnp.asarray(w_hh, f32)
    b_ih = jnp.asarray(b_ih, f32)
    b_hh = jnp.asarray(b_hh, f32)

    # --- Gate-padded weight / bias layout (pad slots must be exactly zero) ---
    def pad_gate_cols(w_t):                              # (rows, 3H) -> (rows, 3Hp)
        rows = w_t.shape[0]
        out = jnp.zeros((rows, 3 * Hp), f32)
        for g in range(3):
            out = out.at[:, g * Hp:g * Hp + H].set(w_t[:, g * H:(g + 1) * H])
        return out

    wih_p = pad_gate_cols(w_ih.T)                                        # (I, 3Hp)
    whh_p = jnp.zeros((Hp, 3 * Hp), f32).at[:H, :].set(pad_gate_cols(w_hh.T))

    # b_ih (all gates) + b_hh (r, z gates) fold into gi; b_hh of the n gate
    # must stay inside r * (...) -> separate kernel input.
    bias_gi = jnp.zeros((1, 3 * Hp), f32)
    for g in range(3):
        bg = b_ih[g * H:(g + 1) * H]
        if g < 2:
            bg = bg + b_hh[g * H:(g + 1) * H]
        bias_gi = bias_gi.at[0, g * Hp:g * Hp + H].set(bg)
    bhn = jnp.zeros((1, Hp), f32).at[0, :H].set(b_hh[2 * H:3 * H])

    # --- Time-major input (projection now fused inside the kernel) -----------
    x_f = jnp.asarray(x, f32)
    if T_pad != T:
        x_f = jnp.pad(x_f, ((0, 0), (0, T_pad - T), (0, 0)))
    x_tm = jnp.transpose(x_f, (1, 0, 2))                 # (T_pad, B, I)

    flops = 2 * T_pad * B * (I + Hp) * 3 * Hp
    transcendentals = 3 * T_pad * B * Hp
    bytes_accessed = 4 * (T_pad * B * I + T_pad * B * Hp
                          + n_b * n_t * ((I + Hp + 1) * 3 * Hp + Hp))

    out_tm = pl.pallas_call(
        _gru_fused_kernel,
        out_shape=jax.ShapeDtypeStruct((T_pad, B, Hp), f32),
        grid_spec=pltpu.PrefetchScalarGridSpec(
            num_scalar_prefetch=0,
            # Time MUST stay the innermost grid axis (h carry re-zeroed at
            # t == 0 for each batch block).
            grid=(n_b, n_t),
            in_specs=[
                pl.BlockSpec((TT, BB, I), lambda b, t: (t, b, 0)),     # x block
                pl.BlockSpec((I, 3 * Hp), lambda b, t: (0, 0)),        # W_ih^T
                pl.BlockSpec((1, 3 * Hp), lambda b, t: (0, 0)),        # folded biases
                pl.BlockSpec((Hp, 3 * Hp), lambda b, t: (0, 0)),       # W_hh^T
                pl.BlockSpec((1, Hp), lambda b, t: (0, 0)),            # b_hh (n gate)
            ],
            out_specs=pl.BlockSpec((TT, BB, Hp), lambda b, t: (t, b, 0)),
            scratch_shapes=[pltpu.VMEM((BB, Hp), f32)],                # hidden carry
        ),
        compiler_params=pltpu.CompilerParams(
            dimension_semantics=("parallel", "arbitrary"),  # batch parallel, time serial
        ),
        cost_estimate=pl.CostEstimate(
            flops=int(flops),
            transcendentals=int(transcendentals),
            bytes_accessed=int(bytes_accessed)),
    )(x_tm, wih_p, bias_gi, whh_p, bhn)

    # Slice lane + time padding BEFORE the transpose (Hp/H less HBM traffic),
    # then back to batch-first.
    return jnp.transpose(out_tm[:T, :, :H], (1, 0, 2))


def gru_reference(x, w_ih, w_hh, b_ih, b_hh):
    """Pure-JAX reference (lax.scan) mirroring torch.nn.GRU semantics."""
    B, T, I = x.shape
    H = w_hh.shape[1]
    wih_t = w_ih.T
    whh_t = w_hh.T

    def step(h, x_t):
        gi = x_t @ wih_t + b_ih
        gh = h @ whh_t + b_hh
        r = jax.nn.sigmoid(gi[:, :H] + gh[:, :H])
        z = jax.nn.sigmoid(gi[:, H:2 * H] + gh[:, H:2 * H])
        n = jnp.tanh(gi[:, 2 * H:] + r * gh[:, 2 * H:])
        h_new = (1.0 - z) * n + z * h
        return h_new, h_new

    h0 = jnp.zeros((B, H), jnp.float32)
    _, ys = lax.scan(step, h0, jnp.swapaxes(x, 0, 1))   # (T, B, H)
    return jnp.swapaxes(ys, 0, 1)                       # (B, T, H)


if __name__ == "__main__":
    key = jax.random.PRNGKey(0)

    def make_inputs(k, B, T, n_input, n_hidden):
        kx, k1, k2, k3, k4 = jax.random.split(k, 5)
        bound = 1.0 / jnp.sqrt(n_hidden)
        x = jax.random.normal(kx, (B, T, n_input), dtype=jnp.float32)
        w_ih = jax.random.uniform(k1, (3 * n_hidden, n_input), jnp.float32, -bound, bound)
        w_hh = jax.random.uniform(k2, (3 * n_hidden, n_hidden), jnp.float32, -bound, bound)
        b_ih = jax.random.uniform(k3, (3 * n_hidden,), jnp.float32, -bound, bound)
        b_hh = jax.random.uniform(k4, (3 * n_hidden,), jnp.float32, -bound, bound)
        return x, w_ih, w_hh, b_ih, b_hh

    # Case 1: Decoder-like small shapes, single time block, single batch block.
    B, T, n_input, n_hidden = 4, 6, 8, 32
    k1, k2 = jax.random.split(key)
    x, w_ih, w_hh, b_ih, b_hh = make_inputs(k1, B, T, n_input, n_hidden)
    out = jax.block_until_ready(gru_decoder_forward(x, w_ih, w_hh, b_ih, b_hh))
    ref = jax.block_until_ready(gru_reference(x, w_ih, w_hh, b_ih, b_hh))
    assert out.shape == (B, T, n_hidden)
    assert jnp.allclose(out, ref, atol=1e-4, rtol=1e-4), "mismatch (case 1)"

    # Case 2: hidden-state carry across multiple time blocks + time padding
    # (T=6 with TT=4 -> T_pad=8).
    out2 = jax.block_until_ready(
        gru_decoder_forward(x, w_ih, w_hh, b_ih, b_hh, time_block=4))
    assert jnp.allclose(out2, ref, atol=1e-4, rtol=1e-4), "mismatch (case 2)"

    # Case 3: explicit 2-way batch split (the v7x / megacore path): B=16 ->
    # two batch blocks of 8, exercising the h re-zero at each new batch block.
    B3, T3 = 16, 10
    x3, w_ih3, w_hh3, b_ih3, b_hh3 = make_inputs(k2, B3, T3, n_input, n_hidden)
    out3 = jax.block_until_ready(
        gru_decoder_forward(x3, w_ih3, w_hh3, b_ih3, b_hh3,
                            time_block=4, batch_blocks=2))
    ref3 = jax.block_until_ready(gru_reference(x3, w_ih3, w_hh3, b_ih3, b_hh3))
    assert out3.shape == (B3, T3, n_hidden)
    assert jnp.allclose(out3, ref3, atol=1e-4, rtol=1e-4), "mismatch (case 3)"

    # Case 4: default (auto) blocking on the same larger batch.
    out4 = jax.block_until_ready(
        gru_decoder_forward(x3, w_ih3, w_hh3, b_ih3, b_hh3))
    assert jnp.allclose(out4, ref3, atol=1e-4, rtol=1e-4), "mismatch (case 4)"

    print("KERNEL_OK")
</pallas_src>

<mosaic_0001>
module attributes {stable_mosaic.version = 11 : i64} {
  func.func @_gru_fused_kernel(%arg0: i32, %arg1: i32, %arg2: memref<6x4x8xf32, #tpu.memory_space<vmem>>, %arg3: memref<8x384xf32, #tpu.memory_space<vmem>>, %arg4: memref<1x384xf32, #tpu.memory_space<vmem>>, %arg5: memref<128x384xf32, #tpu.memory_space<vmem>>, %arg6: memref<1x128xf32, #tpu.memory_space<vmem>>, %arg7: memref<6x4x128xf32, #tpu.memory_space<vmem>>, %arg8: memref<4x128xf32, #tpu.memory_space<vmem>>) attributes {dimension_semantics = [#tpu.dimension_semantics<parallel>, #tpu.dimension_semantics<arbitrary>], iteration_bounds = array<i64: 1, 1>, scalar_prefetch = 0 : i64, scratch_operands = 1 : i64, tpu.core_type = #tpu.core_type<tc>, window_params = [{transform_indices = @transform_0, window_bounds = array<i64: 6, 4, 8>}, {pipeline_mode = #tpu.pipeline_mode<synchronous>, transform_indices = @transform_1, window_bounds = array<i64: 8, 384>}, {pipeline_mode = #tpu.pipeline_mode<synchronous>, transform_indices = @transform_2, window_bounds = array<i64: 1, 384>}, {pipeline_mode = #tpu.pipeline_mode<synchronous>, transform_indices = @transform_3, window_bounds = array<i64: 128, 384>}, {pipeline_mode = #tpu.pipeline_mode<synchronous>, transform_indices = @transform_4, window_bounds = array<i64: 1, 128>}, {transform_indices = @transform_5, window_bounds = array<i64: 6, 4, 128>}]} {
    %c0_i32 = arith.constant 0 : i32
    %0 = arith.cmpi eq, %arg1, %c0_i32 : i32
    %1 = arith.extui %0 : i1 to i32
    %c0_i32_0 = arith.constant 0 : i32
    %2 = arith.cmpi ne, %1, %c0_i32_0 : i32
    scf.if %2 {
      %cst_80 = arith.constant 0.000000e+00 : f32
      %233 = vector.broadcast %cst_80 : f32 to vector<4x128xf32>
      %c0_81 = arith.constant 0 : index
      %c0_82 = arith.constant 0 : index
      %234 = vector.load %arg8[%c0_81, %c0_82] : memref<4x128xf32, #tpu.memory_space<vmem>>, vector<4x128xf32>
      tpu.vector_store %arg8[%c0_81, %c0_82], %233 {strides = array<i32>} : memref<4x128xf32, #tpu.memory_space<vmem>>, vector<4x128xf32>,
    } else {
    }
    %c0 = arith.constant 0 : index
    %c0_1 = arith.constant 0 : index
    %3 = vector.load %arg4[%c0, %c0_1] : memref<1x384xf32, #tpu.memory_space<vmem>>, vector<1x384xf32>
    %4 = vector.shape_cast %3 : vector<1x384xf32> to vector<1x384xf32>
    %5 = vector.broadcast %4 : vector<1x384xf32> to vector<4x384xf32>
    %c0_2 = arith.constant 0 : index
    %c0_3 = arith.constant 0 : index
    %6 = vector.load %arg6[%c0_2, %c0_3] : memref<1x128xf32, #tpu.memory_space<vmem>>, vector<1x128xf32>
    %7 = vector.shape_cast %6 : vector<1x128xf32> to vector<1x128xf32>
    %8 = vector.broadcast %7 : vector<1x128xf32> to vector<4x128xf32>
    %c0_4 = arith.constant 0 : index
    %c0_5 = arith.constant 0 : index
    %9 = vector.load %arg8[%c0_4, %c0_5] : memref<4x128xf32, #tpu.memory_space<vmem>>, vector<4x128xf32>
    %c0_i32_6 = arith.constant 0 : i32
    %10 = arith.index_cast %c0_i32_6 : i32 to index
    %c0_7 = arith.constant 0 : index
    %c0_8 = arith.constant 0 : index
    %11 = vector.load %arg2[%10, %c0_7, %c0_8] : memref<6x4x8xf32, #tpu.memory_space<vmem>>, vector<1x4x8xf32>
    %12 = vector.shape_cast %11 : vector<1x4x8xf32> to vector<4x8xf32>
    %c0_9 = arith.constant 0 : index
    %c0_10 = arith.constant 0 : index
    %13 = vector.load %arg3[%c0_9, %c0_10] : memref<8x384xf32, #tpu.memory_space<vmem>>, vector<8x384xf32>
    %cst = arith.constant dense<0.000000e+00> : vector<4x384xf32>
    %14 = tpu.matmul %12, %13, %cst {dimension_numbers = #tpu.dot_dimension_numbers<[1], [0], [0], [1], [0, 0, 1, 1], [], []>} : vector<4x8xf32>, vector<8x384xf32>, vector<4x384xf32> -> vector<4x384xf32>
    %15 = arith.addf %14, %5 : vector<4x384xf32>
    %c0_11 = arith.constant 0 : index
    %c0_12 = arith.constant 0 : index
    %16 = vector.load %arg5[%c0_11, %c0_12] : memref<128x384xf32, #tpu.memory_space<vmem>>, vector<128x384xf32>
    %cst_13 = arith.constant dense<0.000000e+00> : vector<4x384xf32>
    %17 = tpu.matmul %9, %16, %cst_13 {dimension_numbers = #tpu.dot_dimension_numbers<[1], [0], [0], [1], [0, 0, 1, 1], [], []>} : vector<4x128xf32>, vector<128x384xf32>, vector<4x384xf32> -> vector<4x384xf32>
    %18 = vector.extract_strided_slice %15 {offsets = [0, 0], sizes = [4, 128], strides = [1, 1]} : vector<4x384xf32> to vector<4x128xf32>
    %19 = vector.extract_strided_slice %17 {offsets = [0, 0], sizes = [4, 128], strides = [1, 1]} : vector<4x384xf32> to vector<4x128xf32>
    %20 = arith.addf %18, %19 : vector<4x128xf32>
    %21 = arith.negf %20 : vector<4x128xf32>
    %22 = math.exp %21 : vector<4x128xf32>
    %cst_14 = arith.constant 1.000000e+00 : f32
    %23 = vector.broadcast %cst_14 : f32 to vector<4x128xf32>
    %24 = arith.addf %23, %22 : vector<4x128xf32>
    %25 = arith.divf %23, %24 : vector<4x128xf32>
    %26 = vector.extract_strided_slice %15 {offsets = [0, 128], sizes = [4, 128], strides = [1, 1]} : vector<4x384xf32> to vector<4x128xf32>
    %27 = vector.extract_strided_slice %17 {offsets = [0, 128], sizes = [4, 128], strides = [1, 1]} : vector<4x384xf32> to vector<4x128xf32>
    %28 = arith.addf %26, %27 : vector<4x128xf32>
    %29 = arith.negf %28 : vector<4x128xf32>
    %30 = math.exp %29 : vector<4x128xf32>
    %cst_15 = arith.constant 1.000000e+00 : f32
    %31 = vector.broadcast %cst_15 : f32 to vector<4x128xf32>
    %32 = arith.addf %31, %30 : vector<4x128xf32>
    %33 = arith.divf %31, %32 : vector<4x128xf32>
    %34 = vector.extract_strided_slice %15 {offsets = [0, 256], sizes = [4, 128], strides = [1, 1]} : vector<4x384xf32> to vector<4x128xf32>
    %35 = vector.extract_strided_slice %17 {offsets = [0, 256], sizes = [4, 128], strides = [1, 1]} : vector<4x384xf32> to vector<4x128xf32>
    %36 = arith.addf %35, %8 : vector<4x128xf32>
    %37 = arith.mulf %25, %36 : vector<4x128xf32>
    %38 = arith.addf %34, %37 : vector<4x128xf32>
    %39 = math.tanh %38 : vector<4x128xf32>
    %40 = arith.subf %9, %39 : vector<4x128xf32>
    %41 = arith.mulf %33, %40 : vector<4x128xf32>
    %42 = arith.addf %39, %41 : vector<4x128xf32>
    %43 = arith.index_cast %c0_i32_6 : i32 to index
    %c0_16 = arith.constant 0 : index
    %c0_17 = arith.constant 0 : index
    %44 = vector.load %arg7[%43, %c0_16, %c0_17] : memref<6x4x128xf32, #tpu.memory_space<vmem>>, vector<1x4x128xf32>
    %45 = vector.shape_cast %44 : vector<1x4x128xf32> to vector<4x128xf32>
    %46 = vector.shape_cast %42 : vector<4x128xf32> to vector<1x4x128xf32>
    tpu.vector_store %arg7[%43, %c0_16, %c0_17], %46 {strides = array<i32>} : memref<6x4x128xf32, #tpu.memory_space<vmem>>, vector<1x4x128xf32>,
    %c1_i32 = arith.constant 1 : i32
    %47 = arith.index_cast %c1_i32 : i32 to index
    %c0_18 = arith.constant 0 : index
    %c0_19 = arith.constant 0 : index
    %48 = vector.load %arg2[%47, %c0_18, %c0_19] : memref<6x4x8xf32, #tpu.memory_space<vmem>>, vector<1x4x8xf32>
    %49 = vector.shape_cast %48 : vector<1x4x8xf32> to vector<4x8xf32>
    %c0_20 = arith.constant 0 : index
    %c0_21 = arith.constant 0 : index
    %50 = vector.load %arg3[%c0_20, %c0_21] : memref<8x384xf32, #tpu.memory_space<vmem>>, vector<8x384xf32>
    %cst_22 = arith.constant dense<0.000000e+00> : vector<4x384xf32>
    %51 = tpu.matmul %49, %50, %cst_22 {dimension_numbers = #tpu.dot_dimension_numbers<[1], [0], [0], [1], [0, 0, 1, 1], [], []>} : vector<4x8xf32>, vector<8x384xf32>, vector<4x384xf32> -> vector<4x384xf32>
    %52 = arith.addf %51, %5 : vector<4x384xf32>
    %c0_23 = arith.constant 0 : index
    %c0_24 = arith.constant 0 : index
    %53 = vector.load %arg5[%c0_23, %c0_24] : memref<128x384xf32, #tpu.memory_space<vmem>>, vector<128x384xf32>
    %cst_25 = arith.constant dense<0.000000e+00> : vector<4x384xf32>
    %54 = tpu.matmul %42, %53, %cst_25 {dimension_numbers = #tpu.dot_dimension_numbers<[1], [0], [0], [1], [0, 0, 1, 1], [], []>} : vector<4x128xf32>, vector<128x384xf32>, vector<4x384xf32> -> vector<4x384xf32>
    %55 = vector.extract_strided_slice %52 {offsets = [0, 0], sizes = [4, 128], strides = [1, 1]} : vector<4x384xf32> to vector<4x128xf32>
    %56 = vector.extract_strided_slice %54 {offsets = [0, 0], sizes = [4, 128], strides = [1, 1]} : vector<4x384xf32> to vector<4x128xf32>
    %57 = arith.addf %55, %56 : vector<4x128xf32>
    %58 = arith.negf %57 : vector<4x128xf32>
    %59 = math.exp %58 : vector<4x128xf32>
    %cst_26 = arith.constant 1.000000e+00 : f32
    %60 = vector.broadcast %cst_26 : f32 to vector<4x128xf32>
    %61 = arith.addf %60, %59 : vector<4x128xf32>
    %62 = arith.divf %60, %61 : vector<4x128xf32>
    %63 = vector.extract_strided_slice %52 {offsets = [0, 128], sizes = [4, 128], strides = [1, 1]} : vector<4x384xf32> to vector<4x128xf32>
    %64 = vector.extract_strided_slice %54 {offsets = [0, 128], sizes = [4, 128], strides = [1, 1]} : vector<4x384xf32> to vector<4x128xf32>
    %65 = arith.addf %63, %64 : vector<4x128xf32>
    %66 = arith.negf %65 : vector<4x128xf32>
    %67 = math.exp %66 : vector<4x128xf32>
    %cst_27 = arith.constant 1.000000e+00 : f32
    %68 = vector.broadcast %cst_27 : f32 to vector<4x128xf32>
    %69 = arith.addf %68, %67 : vector<4x128xf32>
    %70 = arith.divf %68, %69 : vector<4x128xf32>
    %71 = vector.extract_strided_slice %52 {offsets = [0, 256], sizes = [4, 128], strides = [1, 1]} : vector<4x384xf32> to vector<4x128xf32>
    %72 = vector.extract_strided_slice %54 {offsets = [0, 256], sizes = [4, 128], strides = [1, 1]} : vector<4x384xf32> to vector<4x128xf32>
    %73 = arith.addf %72, %8 : vector<4x128xf32>
    %74 = arith.mulf %62, %73 : vector<4x128xf32>
    %75 = arith.addf %71, %74 : vector<4x128xf32>
    %76 = math.tanh %75 : vector<4x128xf32>
    %77 = arith.subf %42, %76 : vector<4x128xf32>
    %78 = arith.mulf %70, %77 : vector<4x128xf32>
    %79 = arith.addf %76, %78 : vector<4x128xf32>
    %80 = arith.index_cast %c1_i32 : i32 to index
    %c0_28 = arith.constant 0 : index
    %c0_29 = arith.constant 0 : index
    %81 = vector.load %arg7[%80, %c0_28, %c0_29] : memref<6x4x128xf32, #tpu.memory_space<vmem>>, vector<1x4x128xf32>
    %82 = vector.shape_cast %81 : vector<1x4x128xf32> to vector<4x128xf32>
    %83 = vector.shape_cast %79 : vector<4x128xf32> to vector<1x4x128xf32>
    tpu.vector_store %arg7[%80, %c0_28, %c0_29], %83 {strides = array<i32>} : memref<6x4x128xf32, #tpu.memory_space<vmem>>, vector<1x4x128xf32>,
    %c2_i32 = arith.constant 2 : i32
    %84 = arith.index_cast %c2_i32 : i32 to index
    %c0_30 = arith.constant 0 : index
    %c0_31 = arith.constant 0 : index
    %85 = vector.load %arg2[%84, %c0_30, %c0_31] : memref<6x4x8xf32, #tpu.memory_space<vmem>>, vector<1x4x8xf32>
    %86 = vector.shape_cast %85 : vector<1x4x8xf32> to vector<4x8xf32>
    %c0_32 = arith.constant 0 : index
    %c0_33 = arith.constant 0 : index
    %87 = vector.load %arg3[%c0_32, %c0_33] : memref<8x384xf32, #tpu.memory_space<vmem>>, vector<8x384xf32>
    %cst_34 = arith.constant dense<0.000000e+00> : vector<4x384xf32>
    %88 = tpu.matmul %86, %87, %cst_34 {dimension_numbers = #tpu.dot_dimension_numbers<[1], [0], [0], [1], [0, 0, 1, 1], [], []>} : vector<4x8xf32>, vector<8x384xf32>, vector<4x384xf32> -> vector<4x384xf32>
    %89 = arith.addf %88, %5 : vector<4x384xf32>
    %c0_35 = arith.constant 0 : index
    %c0_36 = arith.constant 0 : index
    %90 = vector.load %arg5[%c0_35, %c0_36] : memref<128x384xf32, #tpu.memory_space<vmem>>, vector<128x384xf32>
    %cst_37 = arith.constant dense<0.000000e+00> : vector<4x384xf32>
    %91 = tpu.matmul %79, %90, %cst_37 {dimension_numbers = #tpu.dot_dimension_numbers<[1], [0], [0], [1], [0, 0, 1, 1], [], []>} : vector<4x128xf32>, vector<128x384xf32>, vector<4x384xf32> -> vector<4x384xf32>
    %92 = vector.extract_strided_slice %89 {offsets = [0, 0], sizes = [4, 128], strides = [1, 1]} : vector<4x384xf32> to vector<4x128xf32>
    %93 = vector.extract_strided_slice %91 {offsets = [0, 0], sizes = [4, 128], strides = [1, 1]} : vector<4x384xf32> to vector<4x128xf32>
    %94 = arith.addf %92, %93 : vector<4x128xf32>
    %95 = arith.negf %94 : vector<4x128xf32>
    %96 = math.exp %95 : vector<4x128xf32>
    %cst_38 = arith.constant 1.000000e+00 : f32
    %97 = vector.broadcast %cst_38 : f32 to vector<4x128xf32>
    %98 = arith.addf %97, %96 : vector<4x128xf32>
    %99 = arith.divf %97, %98 : vector<4x128xf32>
    %100 = vector.extract_strided_slice %89 {offsets = [0, 128], sizes = [4, 128], strides = [1, 1]} : vector<4x384xf32> to vector<4x128xf32>
    %101 = vector.extract_strided_slice %91 {offsets = [0, 128], sizes = [4, 128], strides = [1, 1]} : vector<4x384xf32> to vector<4x128xf32>
    %102 = arith.addf %100, %101 : vector<4x128xf32>
    %103 = arith.negf %102 : vector<4x128xf32>
    %104 = math.exp %103 : vector<4x128xf32>
    %cst_39 = arith.constant 1.000000e+00 : f32
    %105 = vector.broadcast %cst_39 : f32 to vector<4x128xf32>
    %106 = arith.addf %105, %104 : vector<4x128xf32>
    %107 = arith.divf %105, %106 : vector<4x128xf32>
    %108 = vector.extract_strided_slice %89 {offsets = [0, 256], sizes = [4, 128], strides = [1, 1]} : vector<4x384xf32> to vector<4x128xf32>
    %109 = vector.extract_strided_slice %91 {offsets = [0, 256], sizes = [4, 128], strides = [1, 1]} : vector<4x384xf32> to vector<4x128xf32>
    %110 = arith.addf %109, %8 : vector<4x128xf32>
    %111 = arith.mulf %99, %110 : vector<4x128xf32>
    %112 = arith.addf %108, %111 : vector<4x128xf32>
    %113 = math.tanh %112 : vector<4x128xf32>
    %114 = arith.subf %79, %113 : vector<4x128xf32>
    %115 = arith.mulf %107, %114 : vector<4x128xf32>
    %116 = arith.addf %113, %115 : vector<4x128xf32>
    %117 = arith.index_cast %c2_i32 : i32 to index
    %c0_40 = arith.constant 0 : index
    %c0_41 = arith.constant 0 : index
    %118 = vector.load %arg7[%117, %c0_40, %c0_41] : memref<6x4x128xf32, #tpu.memory_space<vmem>>, vector<1x4x128xf32>
    %119 = vector.shape_cast %118 : vector<1x4x128xf32> to vector<4x128xf32>
    %120 = vector.shape_cast %116 : vector<4x128xf32> to vector<1x4x128xf32>
    tpu.vector_store %arg7[%117, %c0_40, %c0_41], %120 {strides = array<i32>} : memref<6x4x128xf32, #tpu.memory_space<vmem>>, vector<1x4x128xf32>,
    %c3_i32 = arith.constant 3 : i32
    %121 = arith.index_cast %c3_i32 : i32 to index
    %c0_42 = arith.constant 0 : index
    %c0_43 = arith.constant 0 : index
    %122 = vector.load %arg2[%121, %c0_42, %c0_43] : memref<6x4x8xf32, #tpu.memory_space<vmem>>, vector<1x4x8xf32>
    %123 = vector.shape_cast %122 : vector<1x4x8xf32> to vector<4x8xf32>
    %c0_44 = arith.constant 0 : index
    %c0_45 = arith.constant 0 : index
    %124 = vector.load %arg3[%c0_44, %c0_45] : memref<8x384xf32, #tpu.memory_space<vmem>>, vector<8x384xf32>
    %cst_46 = arith.constant dense<0.000000e+00> : vector<4x384xf32>
    %125 = tpu.matmul %123, %124, %cst_46 {dimension_numbers = #tpu.dot_dimension_numbers<[1], [0], [0], [1], [0, 0, 1, 1], [], []>} : vector<4x8xf32>, vector<8x384xf32>, vector<4x384xf32> -> vector<4x384xf32>
    %126 = arith.addf %125, %5 : vector<4x384xf32>
    %c0_47 = arith.constant 0 : index
    %c0_48 = arith.constant 0 : index
    %127 = vector.load %arg5[%c0_47, %c0_48] : memref<128x384xf32, #tpu.memory_space<vmem>>, vector<128x384xf32>
    %cst_49 = arith.constant dense<0.000000e+00> : vector<4x384xf32>
    %128 = tpu.matmul %116, %127, %cst_49 {dimension_numbers = #tpu.dot_dimension_numbers<[1], [0], [0], [1], [0, 0, 1, 1], [], []>} : vector<4x128xf32>, vector<128x384xf32>, vector<4x384xf32> -> vector<4x384xf32>
    %129 = vector.extract_strided_slice %126 {offsets = [0, 0], sizes = [4, 128], strides = [1, 1]} : vector<4x384xf32> to vector<4x128xf32>
    %130 = vector.extract_strided_slice %128 {offsets = [0, 0], sizes = [4, 128], strides = [1, 1]} : vector<4x384xf32> to vector<4x128xf32>
    %131 = arith.addf %129, %130 : vector<4x128xf32>
    %132 = arith.negf %131 : vector<4x128xf32>
    %133 = math.exp %132 : vector<4x128xf32>
    %cst_50 = arith.constant 1.000000e+00 : f32
    %134 = vector.broadcast %cst_50 : f32 to vector<4x128xf32>
    %135 = arith.addf %134, %133 : vector<4x128xf32>
    %136 = arith.divf %134, %135 : vector<4x128xf32>
    %137 = vector.extract_strided_slice %126 {offsets = [0, 128], sizes = [4, 128], strides = [1, 1]} : vector<4x384xf32> to vector<4x128xf32>
    %138 = vector.extract_strided_slice %128 {offsets = [0, 128], sizes = [4, 128], strides = [1, 1]} : vector<4x384xf32> to vector<4x128xf32>
    %139 = arith.addf %137, %138 : vector<4x128xf32>
    %140 = arith.negf %139 : vector<4x128xf32>
    %141 = math.exp %140 : vector<4x128xf32>
    %cst_51 = arith.constant 1.000000e+00 : f32
    %142 = vector.broadcast %cst_51 : f32 to vector<4x128xf32>
    %143 = arith.addf %142, %141 : vector<4x128xf32>
    %144 = arith.divf %142, %143 : vector<4x128xf32>
    %145 = vector.extract_strided_slice %126 {offsets = [0, 256], sizes = [4, 128], strides = [1, 1]} : vector<4x384xf32> to vector<4x128xf32>
    %146 = vector.extract_strided_slice %128 {offsets = [0, 256], sizes = [4, 128], strides = [1, 1]} : vector<4x384xf32> to vector<4x128xf32>
    %147 = arith.addf %146, %8 : vector<4x128xf32>
    %148 = arith.mulf %136, %147 : vector<4x128xf32>
    %149 = arith.addf %145, %148 : vector<4x128xf32>
    %150 = math.tanh %149 : vector<4x128xf32>
    %151 = arith.subf %116, %150 : vector<4x128xf32>
    %152 = arith.mulf %144, %151 : vector<4x128xf32>
    %153 = arith.addf %150, %152 : vector<4x128xf32>
    %154 = arith.index_cast %c3_i32 : i32 to index
    %c0_52 = arith.constant 0 : index
    %c0_53 = arith.constant 0 : index
    %155 = vector.load %arg7[%154, %c0_52, %c0_53] : memref<6x4x128xf32, #tpu.memory_space<vmem>>, vector<1x4x128xf32>
    %156 = vector.shape_cast %155 : vector<1x4x128xf32> to vector<4x128xf32>
    %157 = vector.shape_cast %153 : vector<4x128xf32> to vector<1x4x128xf32>
    tpu.vector_store %arg7[%154, %c0_52, %c0_53], %157 {strides = array<i32>} : memref<6x4x128xf32, #tpu.memory_space<vmem>>, vector<1x4x128xf32>,
    %c4_i32 = arith.constant 4 : i32
    %158 = arith.index_cast %c4_i32 : i32 to index
    %c0_54 = arith.constant 0 : index
    %c0_55 = arith.constant 0 : index
    %159 = vector.load %arg2[%158, %c0_54, %c0_55] : memref<6x4x8xf32, #tpu.memory_space<vmem>>, vector<1x4x8xf32>
    %160 = vector.shape_cast %159 : vector<1x4x8xf32> to vector<4x8xf32>
    %c0_56 = arith.constant 0 : index
    %c0_57 = arith.constant 0 : index
    %161 = vector.load %arg3[%c0_56, %c0_57] : memref<8x384xf32, #tpu.memory_space<vmem>>, vector<8x384xf32>
    %cst_58 = arith.constant dense<0.000000e+00> : vector<4x384xf32>
    %162 = tpu.matmul %160, %161, %cst_58 {dimension_numbers = #tpu.dot_dimension_numbers<[1], [0], [0], [1], [0, 0, 1, 1], [], []>} : vector<4x8xf32>, vector<8x384xf32>, vector<4x384xf32> -> vector<4x384xf32>
    %163 = arith.addf %162, %5 : vector<4x384xf32>
    %c0_59 = arith.constant 0 : index
    %c0_60 = arith.constant 0 : index
    %164 = vector.load %arg5[%c0_59, %c0_60] : memref<128x384xf32, #tpu.memory_space<vmem>>, vector<128x384xf32>
    %cst_61 = arith.constant dense<0.000000e+00> : vector<4x384xf32>
    %165 = tpu.matmul %153, %164, %cst_61 {dimension_numbers = #tpu.dot_dimension_numbers<[1], [0], [0], [1], [0, 0, 1, 1], [], []>} : vector<4x128xf32>, vector<128x384xf32>, vector<4x384xf32> -> vector<4x384xf32>
    %166 = vector.extract_strided_slice %163 {offsets = [0, 0], sizes = [4, 128], strides = [1, 1]} : vector<4x384xf32> to vector<4x128xf32>
    %167 = vector.extract_strided_slice %165 {offsets = [0, 0], sizes = [4, 128], strides = [1, 1]} : vector<4x384xf32> to vector<4x128xf32>
    %168 = arith.addf %166, %167 : vector<4x128xf32>
    %169 = arith.negf %168 : vector<4x128xf32>
    %170 = math.exp %169 : vector<4x128xf32>
    %cst_62 = arith.constant 1.000000e+00 : f32
    %171 = vector.broadcast %cst_62 : f32 to vector<4x128xf32>
    %172 = arith.addf %171, %170 : vector<4x128xf32>
    %173 = arith.divf %171, %172 : vector<4x128xf32>
    %174 = vector.extract_strided_slice %163 {offsets = [0, 128], sizes = [4, 128], strides = [1, 1]} : vector<4x384xf32> to vector<4x128xf32>
    %175 = vector.extract_strided_slice %165 {offsets = [0, 128], sizes = [4, 128], strides = [1, 1]} : vector<4x384xf32> to vector<4x128xf32>
    %176 = arith.addf %174, %175 : vector<4x128xf32>
    %177 = arith.negf %176 : vector<4x128xf32>
    %178 = math.exp %177 : vector<4x128xf32>
    %cst_63 = arith.constant 1.000000e+00 : f32
    %179 = vector.broadcast %cst_63 : f32 to vector<4x128xf32>
    %180 = arith.addf %179, %178 : vector<4x128xf32>
    %181 = arith.divf %179, %180 : vector<4x128xf32>
    %182 = vector.extract_strided_slice %163 {offsets = [0, 256], sizes = [4, 128], strides = [1, 1]} : vector<4x384xf32> to vector<4x128xf32>
    %183 = vector.extract_strided_slice %165 {offsets = [0, 256], sizes = [4, 128], strides = [1, 1]} : vector<4x384xf32> to vector<4x128xf32>
    %184 = arith.addf %183, %8 : vector<4x128xf32>
    %185 = arith.mulf %173, %184 : vector<4x128xf32>
    %186 = arith.addf %182, %185 : vector<4x128xf32>
    %187 = math.tanh %186 : vector<4x128xf32>
    %188 = arith.subf %153, %187 : vector<4x128xf32>
    %189 = arith.mulf %181, %188 : vector<4x128xf32>
    %190 = arith.addf %187, %189 : vector<4x128xf32>
    %191 = arith.index_cast %c4_i32 : i32 to index
    %c0_64 = arith.constant 0 : index
    %c0_65 = arith.constant 0 : index
    %192 = vector.load %arg7[%191, %c0_64, %c0_65] : memref<6x4x128xf32, #tpu.memory_space<vmem>>, vector<1x4x128xf32>
    %193 = vector.shape_cast %192 : vector<1x4x128xf32> to vector<4x128xf32>
    %194 = vector.shape_cast %190 : vector<4x128xf32> to vector<1x4x128xf32>
    tpu.vector_store %arg7[%191, %c0_64, %c0_65], %194 {strides = array<i32>} : memref<6x4x128xf32, #tpu.memory_space<vmem>>, vector<1x4x128xf32>,
    %c5_i32 = arith.constant 5 : i32
    %195 = arith.index_cast %c5_i32 : i32 to index
    %c0_66 = arith.constant 0 : index
    %c0_67 = arith.constant 0 : index
    %196 = vector.load %arg2[%195, %c0_66, %c0_67] : memref<6x4x8xf32, #tpu.memory_space<vmem>>, vector<1x4x8xf32>
    %197 = vector.shape_cast %196 : vector<1x4x8xf32> to vector<4x8xf32>
    %c0_68 = arith.constant 0 : index
    %c0_69 = arith.constant 0 : index
    %198 = vector.load %arg3[%c0_68, %c0_69] : memref<8x384xf32, #tpu.memory_space<vmem>>, vector<8x384xf32>
    %cst_70 = arith.constant dense<0.000000e+00> : vector<4x384xf32>
    %199 = tpu.matmul %197, %198, %cst_70 {dimension_numbers = #tpu.dot_dimension_numbers<[1], [0], [0], [1], [0, 0, 1, 1], [], []>} : vector<4x8xf32>, vector<8x384xf32>, vector<4x384xf32> -> vector<4x384xf32>
    %200 = arith.addf %199, %5 : vector<4x384xf32>
    %c0_71 = arith.constant 0 : index
    %c0_72 = arith.constant 0 : index
    %201 = vector.load %arg5[%c0_71, %c0_72] : memref<128x384xf32, #tpu.memory_space<vmem>>, vector<128x384xf32>
    %cst_73 = arith.constant dense<0.000000e+00> : vector<4x384xf32>
    %202 = tpu.matmul %190, %201, %cst_73 {dimension_numbers = #tpu.dot_dimension_numbers<[1], [0], [0], [1], [0, 0, 1, 1], [], []>} : vector<4x128xf32>, vector<128x384xf32>, vector<4x384xf32> -> vector<4x384xf32>
    %203 = vector.extract_strided_slice %200 {offsets = [0, 0], sizes = [4, 128], strides = [1, 1]} : vector<4x384xf32> to vector<4x128xf32>
    %204 = vector.extract_strided_slice %202 {offsets = [0, 0], sizes = [4, 128], strides = [1, 1]} : vector<4x384xf32> to vector<4x128xf32>
    %205 = arith.addf %203, %204 : vector<4x128xf32>
    %206 = arith.negf %205 : vector<4x128xf32>
    %207 = math.exp %206 : vector<4x128xf32>
    %cst_74 = arith.constant 1.000000e+00 : f32
    %208 = vector.broadcast %cst_74 : f32 to vector<4x128xf32>
    %209 = arith.addf %208, %207 : vector<4x128xf32>
    %210 = arith.divf %208, %209 : vector<4x128xf32>
    %211 = vector.extract_strided_slice %200 {offsets = [0, 128], sizes = [4, 128], strides = [1, 1]} : vector<4x384xf32> to vector<4x128xf32>
    %212 = vector.extract_strided_slice %202 {offsets = [0, 128], sizes = [4, 128], strides = [1, 1]} : vector<4x384xf32> to vector<4x128xf32>
    %213 = arith.addf %211, %212 : vector<4x128xf32>
    %214 = arith.negf %213 : vector<4x128xf32>
    %215 = math.exp %214 : vector<4x128xf32>
    %cst_75 = arith.constant 1.000000e+00 : f32
    %216 = vector.broadcast %cst_75 : f32 to vector<4x128xf32>
    %217 = arith.addf %216, %215 : vector<4x128xf32>
    %218 = arith.divf %216, %217 : vector<4x128xf32>
    %219 = vector.extract_strided_slice %200 {offsets = [0, 256], sizes = [4, 128], strides = [1, 1]} : vector<4x384xf32> to vector<4x128xf32>
    %220 = vector.extract_strided_slice %202 {offsets = [0, 256], sizes = [4, 128], strides = [1, 1]} : vector<4x384xf32> to vector<4x128xf32>
    %221 = arith.addf %220, %8 : vector<4x128xf32>
    %222 = arith.mulf %210, %221 : vector<4x128xf32>
    %223 = arith.addf %219, %222 : vector<4x128xf32>
    %224 = math.tanh %223 : vector<4x128xf32>
    %225 = arith.subf %190, %224 : vector<4x128xf32>
    %226 = arith.mulf %218, %225 : vector<4x128xf32>
    %227 = arith.addf %224, %226 : vector<4x128xf32>
    %228 = arith.index_cast %c5_i32 : i32 to index
    %c0_76 = arith.constant 0 : index
    %c0_77 = arith.constant 0 : index
    %229 = vector.load %arg7[%228, %c0_76, %c0_77] : memref<6x4x128xf32, #tpu.memory_space<vmem>>, vector<1x4x128xf32>
    %230 = vector.shape_cast %229 : vector<1x4x128xf32> to vector<4x128xf32>
    %231 = vector.shape_cast %227 : vector<4x128xf32> to vector<1x4x128xf32>
    tpu.vector_store %arg7[%228, %c0_76, %c0_77], %231 {strides = array<i32>} : memref<6x4x128xf32, #tpu.memory_space<vmem>>, vector<1x4x128xf32>,
    %c6_i32 = arith.constant 6 : i32
    %c0_78 = arith.constant 0 : index
    %c0_79 = arith.constant 0 : index
    %232 = vector.load %arg8[%c0_78, %c0_79] : memref<4x128xf32, #tpu.memory_space<vmem>>, vector<4x128xf32>
    tpu.vector_store %arg8[%c0_78, %c0_79], %227 {strides = array<i32>} : memref<4x128xf32, #tpu.memory_space<vmem>>, vector<4x128xf32>,
    return
  }
  func.func @transform_0(%arg0: i32, %arg1: i32) -> (i32, i32, i32) {
    %c0_i32 = arith.constant 0 : i32
    %c0_i32_0 = arith.constant 0 : i32
    return %arg1, %arg0, %c0_i32 : i32, i32, i32
  }
  func.func @transform_1(%arg0: i32, %arg1: i32) -> (i32, i32) {
    %c0_i32 = arith.constant 0 : i32
    %c0_i32_0 = arith.constant 0 : i32
    %c0_i32_1 = arith.constant 0 : i32
    return %c0_i32, %c0_i32_0 : i32, i32
  }
  func.func @transform_2(%arg0: i32, %arg1: i32) -> (i32, i32) {
    %c0_i32 = arith.constant 0 : i32
    %c0_i32_0 = arith.constant 0 : i32
    %c0_i32_1 = arith.constant 0 : i32
    return %c0_i32, %c0_i32_0 : i32, i32
  }
  func.func @transform_3(%arg0: i32, %arg1: i32) -> (i32, i32) {
    %c0_i32 = arith.constant 0 : i32
    %c0_i32_0 = arith.constant 0 : i32
    %c0_i32_1 = arith.constant 0 : i32
    return %c0_i32, %c0_i32_0 : i32, i32
  }
  func.func @transform_4(%arg0: i32, %arg1: i32) -> (i32, i32) {
    %c0_i32 = arith.constant 0 : i32
    %c0_i32_0 = arith.constant 0 : i32
    %c0_i32_1 = arith.constant 0 : i32
    return %c0_i32, %c0_i32_0 : i32, i32
  }
  func.func @transform_5(%arg0: i32, %arg1: i32) -> (i32, i32, i32) {
    %c0_i32 = arith.constant 0 : i32
    %c0_i32_0 = arith.constant 0 : i32
    return %arg1, %arg0, %c0_i32 : i32, i32, i32
  }
}

</mosaic_0001>

<llo_original>
// kernel: tpu_custom_call.1
$region0: #{tpu_custom_call.1}
  #allocation0 [shape = 'u32[]', space=smem, size = 0x4, offset = 0x4, fixed_abs, tag = 'smem constant byte address 0x4 - core index']
  #allocation1 [shape = 'u32[144,128]{1,0:T(1,128)}', space=vmem, size = 0x12000, scoped, tag = 'internal scratch']
  #allocation2 [shape = 'f32[4,128]{1,0:T(4,128)}', space=vmem, size = 0x800, scoped, tag = 'scratch operand']
  %s0 = inlined_call_operand.hbm [shape: f32[6,4,8], index: 0, kind: input, shape index: {}]
  %s1 = inlined_call_operand.hbm [shape: f32[8,384], index: 1, kind: input, shape index: {}]
  %s2 = inlined_call_operand.vmem [shape: f32[1,384], index: 2, kind: input, shape index: {}]
  %s3 = inlined_call_operand.hbm [shape: f32[128,384], index: 3, kind: input, shape index: {}]
  %s4 = inlined_call_operand.vmem [shape: f32[1,128], index: 4, kind: input, shape index: {}]
  %s5 = inlined_call_operand.hbm [shape: f32[6,4,128], index: 5, kind: output, shape index: {}]
  %s6 = sld [smem:[#allocation0]]
  $region46: #{tpu_custom_call.1} parent=0
    _
  %s8 = ssub.s32 1, %s6
  %s9 = scalar_select 0, %s8, %s6
  $region1: #{tpu_custom_call.1} parent=0
    #allocation3 [shape = 'u8[12288]{0}', space=vmem, size = 0x3000, scoped, tag = 'input window, operand 0, single buffered']
    #allocation4 [shape = 's32[1]{0}', space=sflag, size = 0x4, scoped, tag = 'scoped memory for tpu_custom_call.1']
    #allocation5 [shape = 's32[1]{0}', space=sflag, size = 0x4, scoped, tag = 'scoped memory for tpu_custom_call.1']
    #allocation6 [shape = 'u8[12288]{0}', space=vmem, size = 0x3000, scoped, tag = 'input window, operand 1, single buffered']
    #allocation7 [shape = 's32[1]{0}', space=sflag, size = 0x4, scoped, tag = 'scoped memory for tpu_custom_call.1']
    #allocation8 [shape = 'u8[196608]{0}', space=vmem, size = 0x30000, scoped, tag = 'input window, operand 3, single buffered']
    #allocation9 [shape = 'u8[12288]{0}', space=vmem, size = 0x3000, scoped, tag = 'output window, operand 0, single buffered']
    %10 = vsyncpa [#allocation4], 0
    %11 = vsyncpa [#allocation7], 0
    %12 = vsyncpa [#allocation5], 0
    // Predicated region
    $region2: #{tpu_custom_call.1} parent=1 // pred_check
      _
    $region3: #{tpu_custom_call.1} parent=1 // pred_check_branch
      %14 = sbr.rel (0) target = $region5
    $region4: #{tpu_custom_call.1} parent=1 // pred_region
      %s16 = ssub.s32 384, 384
      %17 = vsyncadd [#allocation4], %s16
      %s18 = sshll.u32 [#allocation3], 4
      %s19 = int_to_ptr.vmem [resolvable:$true] %s18
      %24 = dma.hbm_to_vmem [thread:$0]  %s0, 384, %s19, [#allocation4], 64, 64, 4
    $region5: #{tpu_custom_call.1} parent=1 // pred_fallthru
      _
    // Predicated region
    $region6: #{tpu_custom_call.1} parent=1 // pred_check
      _
    $region7: #{tpu_custom_call.1} parent=1 // pred_check_branch
      %26 = sbr.rel (0) target = $region9
    $region8: #{tpu_custom_call.1} parent=1 // pred_region
      %s28 = ssub.s32 384, 384
      %29 = vsyncadd [#allocation7], %s28
      %s31 = sshll.u32 [#allocation6], 4
      %s32 = int_to_ptr.vmem [resolvable:$true] %s31
      %34 = dma.hbm_to_vmem [thread:$0]  %s1, 384, %s32, [#allocation7]
    $region9: #{tpu_custom_call.1} parent=1 // pred_fallthru
      _
    // Predicated region
    $region10: #{tpu_custom_call.1} parent=1 // pred_check
      _
    $region11: #{tpu_custom_call.1} parent=1 // pred_check_branch
      %36 = sbr.rel (0) target = $region13
    $region12: #{tpu_custom_call.1} parent=1 // pred_region
      _
    $region13: #{tpu_custom_call.1} parent=1 // pred_fallthru
      _
    // Predicated region
    $region14: #{tpu_custom_call.1} parent=1 // pred_check
      _
    $region15: #{tpu_custom_call.1} parent=1 // pred_check_branch
      %38 = sbr.rel (0) target = $region17
    $region16: #{tpu_custom_call.1} parent=1 // pred_region
      %s40 = ssub.s32 6144, 6144
      %41 = vsyncadd [#allocation7], %s40
      %s42 = sshll.u32 [#allocation8], 4
      %s43 = int_to_ptr.vmem [resolvable:$true] %s42
      %48 = dma.hbm_to_vmem [thread:$0]  %s3, 6144, %s43, [#allocation7], 384, 384, 24
    $region17: #{tpu_custom_call.1} parent=1 // pred_fallthru
      _
    // Predicated region
    $region18: #{tpu_custom_call.1} parent=1 // pred_check
      _
    $region19: #{tpu_custom_call.1} parent=1 // pred_check_branch
      %50 = sbr.rel (0) target = $region21
    $region20: #{tpu_custom_call.1} parent=1 // pred_region
      _
    $region21: #{tpu_custom_call.1} parent=1 // pred_fallthru
      _
    // Predicated region
    $region22: #{tpu_custom_call.1} parent=1 // pred_check
      _
    $region23: #{tpu_custom_call.1} parent=1 // pred_check_branch
      %52 = sbr.rel (0) target = $region25
    $region24: #{tpu_custom_call.1} parent=1 // pred_region
      %53 = dma.done [#allocation4], 384
    $region25: #{tpu_custom_call.1} parent=1 // pred_fallthru
      _
    // Predicated region
    $region26: #{tpu_custom_call.1} parent=1 // pred_check
      _
    $region27: #{tpu_custom_call.1} parent=1 // pred_check_branch
      %55 = sbr.rel (0) target = $region29
    $region28: #{tpu_custom_call.1} parent=1 // pred_region
      %56 = dma.done [#allocation7], 384
    $region29: #{tpu_custom_call.1} parent=1 // pred_fallthru
      _
    // Predicated region
    $region30: #{tpu_custom_call.1} parent=1 // pred_check
      _
    $region31: #{tpu_custom_call.1} parent=1 // pred_check_branch
      %58 = sbr.rel (0) target = $region33
    $region32: #{tpu_custom_call.1} parent=1 // pred_region
      %59 = dma.done [#allocation7], 6144
    $region33: #{tpu_custom_call.1} parent=1 // pred_fallthru
      _
    %p60 = scmp.eq.s32.totalorder 0, 0
    // Predicated region
    $region34: #{tpu_custom_call.1} parent=1 // pred_check
      %p61 = pneg %p60
    $region35: #{tpu_custom_call.1} parent=1 // pred_check_branch
      %63 = sbr.rel (%p61) target = $region37
    $region36: #{tpu_custom_call.1} parent=1 // pred_region
      %64 = vst [vmem:[#allocation2] sm:$0xf] 0.0
    $region37: #{tpu_custom_call.1} parent=1 // pred_fallthru
      _
    %v65 = vld [vmem:[%s2] sm:$0x7]
    %v67 = vlaneseq
    %v68 = vshrl.u32 %v67, 7
    %v69 = vsub.s32 0, %v68
    %v70 = vrot.slane %v65, %v69
    %v71 = vlaneseq
    %v72 = vshrl.u32 %v71, 7
    %v73 = vsub.s32 1, %v72
    %v74 = vrot.slane %v65, %v73
    %v75 = vlaneseq
    %v76 = vshrl.u32 %v75, 7
    %v77 = vsub.s32 2, %v76
    %v78 = vrot.slane %v65, %v77
    %v82 = vld [vmem:[%s4] sm:$0x1]
    %v84 = vlaneseq
    %v85 = vshrl.u32 %v84, 7
    %v86 = vsub.s32 0, %v85
    %v87 = vrot.slane %v82, %v86
    %v89 = vld [vmem:[#allocation2] sm:$0xf]
    %v90 = vld [vmem:[#allocation3] sm:$0xf]
    %v91 = vld [vmem:[#allocation6] sm:$0xff]
    %v92 = vld [vmem:[#allocation6 + $0x8] sm:$0xff]
    %v93 = vld [vmem:[#allocation6 + $0x10] sm:$0xff]
    %vm94 = vcmask 64512
    %v96 = vsel %vm94, %v90, 0
    %98 = vmatprep.subr.mxu0 %v92
    %99 = vmatpush1.msra.mxu0 %v91
    %100 = vmatprep.subr.mxu0 0.0
    %101 = vmatpush1.msra.mxu0 0.0
    %102 = vmatprep.subr.mxu0 0.0
    %103 = vmatpush1.msra.mxu0 0.0
    %104 = vmatprep.subr.mxu0 0.0
    %105 = vmatpush1.msra.mxu0 0.0
    %106 = vmatprep.subr.mxu0 0.0
    %107 = vmatpush1.msra.mxu0 0.0
    %108 = vmatprep.subr.mxu0 0.0
    %109 = vmatpush1.msra.mxu0 0.0
    %110 = vmatprep.subr.mxu0 0.0
    %111 = vmatpush1.msra.mxu0 0.0
    %112 = vmatprep.subr.mxu0 0.0
    %113 = vmatpush1.msra.mxu0 0.0
    %114 = vmatprep.subr.mxu0 0.0
    %115 = vmatpush1.msra.mxu0 0.0
    %116 = vmatprep.subr.mxu0 0.0
    %117 = vmatpush1.msra.mxu0 0.0
    %118 = vmatprep.subr.mxu0 0.0
    %119 = vmatpush1.msra.mxu0 0.0
    %120 = vmatprep.subr.mxu0 0.0
    %121 = vmatpush1.msra.mxu0 0.0
    %122 = vmatprep.subr.mxu0 0.0
    %123 = vmatpush1.msra.mxu0 0.0
    %124 = vmatprep.subr.mxu0 0.0
    %125 = vmatpush1.msra.mxu0 0.0
    %126 = vmatprep.subr.mxu0 0.0
    %127 = vmatpush1.msra.mxu0 0.0
    %128 = vmatprep.subr.mxu0 0.0
    %129 = vmatpush1.msra.mxu0 0.0
    %130 = vmatprep.subr.mxu0 0.0
    %131 = vmatpush1.msra.mxu0 0.0
    %132 = vmatprep.subr.mxu0 0.0
    %133 = vmatpush1.msra.mxu0 0.0
    %134 = vmatprep.subr.mxu0 0.0
    %135 = vmatpush1.msra.mxu0 0.0
    %136 = vmatprep.subr.mxu0 0.0
    %137 = vmatpush1.msra.mxu0 0.0
    %138 = vmatprep.subr.mxu0 0.0
    %139 = vmatpush1.msra.mxu0 0.0
    %140 = vmatprep.subr.mxu0 0.0
    %141 = vmatpush1.msra.mxu0 0.0
    %142 = vmatprep.subr.mxu0 0.0
    %143 = vmatpush1.msra.mxu0 0.0
    %144 = vmatprep.subr.mxu0 0.0
    %145 = vmatpush1.msra.mxu0 0.0
    %146 = vmatprep.subr.mxu0 0.0
    %147 = vmatpush1.msra.mxu0 0.0
    %148 = vmatprep.subr.mxu0 0.0
    %149 = vmatpush1.msra.mxu0 0.0
    %150 = vmatprep.subr.mxu0 0.0
    %151 = vmatpush1.msra.mxu0 0.0
    %152 = vmatprep.subr.mxu0 0.0
    %153 = vmatpush1.msra.mxu0 0.0
    %154 = vmatprep.subr.mxu0 0.0
    %155 = vmatpush1.msra.mxu0 0.0
    %156 = vmatprep.subr.mxu0 0.0
    %157 = vmatpush1.msra.mxu0 0.0
    %158 = vmatprep.subr.mxu0 0.0
    %159 = vmatpush1.msra.mxu0 0.0
    %160 = vmatprep.subr.mxu0 0.0
    %161 = vmatpush1.msra.mxu0 0.0
    %162 = vmatprep.mubr.f32.mxu0 0.0
    %163 = vmatmul.mubr.f32.gmra.mrb[0].mxu0 %v96
    %v164 = vpop.f32.mrb[0].mxu0
    %v165 = vadd.f32 %v70, %v164
    %v166 = vpop.f32.mrb[0].mxu0
    %v167 = vadd.f32 %v74, %v166
    %168 = vdwg.mxu0
    %169 = vmatprep.subr.mxu0 0.0
    %170 = vmatpush1.msra.mxu0 %v93
    %171 = vmatprep.subr.mxu0 0.0
    %172 = vmatpush1.msra.mxu0 0.0
    %173 = vmatprep.subr.mxu0 0.0
    %174 = vmatpush1.msra.mxu0 0.0
    %175 = vmatprep.subr.mxu0 0.0
    %176 = vmatpush1.msra.mxu0 0.0
    %177 = vmatprep.subr.mxu0 0.0
    %178 = vmatpush1.msra.mxu0 0.0
    %179 = vmatprep.subr.mxu0 0.0
    %180 = vmatpush1.msra.mxu0 0.0
    %181 = vmatprep.subr.mxu0 0.0
    %182 = vmatpush1.msra.mxu0 0.0
    %183 = vmatprep.subr.mxu0 0.0
    %184 = vmatpush1.msra.mxu0 0.0
    %185 = vmatprep.subr.mxu0 0.0
    %186 = vmatpush1.msra.mxu0 0.0
    %187 = vmatprep.subr.mxu0 0.0
    %188 = vmatpush1.msra.mxu0 0.0
    %189 = vmatprep.subr.mxu0 0.0
    %190 = vmatpush1.msra.mxu0 0.0
    %191 = vmatprep.subr.mxu0 0.0
    %192 = vmatpush1.msra.mxu0 0.0
    %193 = vmatprep.subr.mxu0 0.0
    %194 = vmatpush1.msra.mxu0 0.0
    %195 = vmatprep.subr.mxu0 0.0
    %196 = vmatpush1.msra.mxu0 0.0
    %197 = vmatprep.subr.mxu0 0.0
    %198 = vmatpush1.msra.mxu0 0.0
    %199 = vmatprep.subr.mxu0 0.0
    %200 = vmatpush1.msra.mxu0 0.0
    %201 = vmatprep.subr.mxu0 0.0
    %202 = vmatpush1.msra.mxu0 0.0
    %203 = vmatprep.subr.mxu0 0.0
    %204 = vmatpush1.msra.mxu0 0.0
    %205 = vmatprep.subr.mxu0 0.0
    %206 = vmatpush1.msra.mxu0 0.0
    %207 = vmatprep.subr.mxu0 0.0
    %208 = vmatpush1.msra.mxu0 0.0
    %209 = vmatprep.subr.mxu0 0.0
    %210 = vmatpush1.msra.mxu0 0.0
    %211 = vmatprep.subr.mxu0 0.0
    %212 = vmatpush1.msra.mxu0 0.0
    %213 = vmatprep.subr.mxu0 0.0
    %214 = vmatpush1.msra.mxu0 0.0
    %215 = vmatprep.subr.mxu0 0.0
    %216 = vmatpush1.msra.mxu0 0.0
    %217 = vmatprep.subr.mxu0 0.0
    %218 = vmatpush1.msra.mxu0 0.0
    %219 = vmatprep.subr.mxu0 0.0
    %220 = vmatpush1.msra.mxu0 0.0
    %221 = vmatprep.subr.mxu0 0.0
    %222 = vmatpush1.msra.mxu0 0.0
    %223 = vmatprep.subr.mxu0 0.0
    %224 = vmatpush1.msra.mxu0 0.0
    %225 = vmatprep.subr.mxu0 0.0
    %226 = vmatpush1.msra.mxu0 0.0
    %227 = vmatprep.subr.mxu0 0.0
    %228 = vmatpush1.msra.mxu0 0.0
    %229 = vmatprep.subr.mxu0 0.0
    %230 = vmatpush1.msra.mxu0 0.0
    %231 = vmatprep.subr.mxu0 0.0
    %232 = vmatpush1.msra.mxu0 0.0
    %233 = vmatprep.mubr.f32.mxu0 0.0
    %234 = vmatmul.mubr.f32.gmra.mrb[0].mxu0 %v96
    %v235 = vpop.f32.mrb[0].mxu0
    %v236 = vadd.f32 %v78, %v235
    %v237 = vpop.f32.mrb[0].mxu0
    %238 = vdwg.mxu0
    %v239 = vld [vmem:[#allocation8] sm:$0xff]
    %v240 = vld [vmem:[#allocation8 + $0x8] sm:$0xff]
    %v241 = vld [vmem:[#allocation8 + $0x10] sm:$0xff]
    %v242 = vld [vmem:[#allocation8 + $0x18] sm:$0xff]
    %v243 = vld [vmem:[#allocation8 + $0x20] sm:$0xff]
    %v244 = vld [vmem:[#allocation8 + $0x28] sm:$0xff]
    %v245 = vld [vmem:[#allocation8 + $0x30] sm:$0xff]
    %v246 = vld [vmem:[#allocation8 + $0x38] sm:$0xff]
    %v247 = vld [vmem:[#allocation8 + $0x40] sm:$0xff]
    %v248 = vld [vmem:[#allocation8 + $0x48] sm:$0xff]
    %v249 = vld [vmem:[#allocation8 + $0x50] sm:$0xff]
    %v250 = vld [vmem:[#allocation8 + $0x58] sm:$0xff]
    %v251 = vld [vmem:[#allocation8 + $0x60] sm:$0xff]
    %v252 = vld [vmem:[#allocation8 + $0x68] sm:$0xff]
    %v253 = vld [vmem:[#allocation8 + $0x70] sm:$0xff]
    %v254 = vld [vmem:[#allocation8 + $0x78] sm:$0xff]
    %v255 = vld [vmem:[#allocation8 + $0x80] sm:$0xff]
    %v256 = vld [vmem:[#allocation8 + $0x88] sm:$0xff]
    %v257 = vld [vmem:[#allocation8 + $0x90] sm:$0xff]
    %v258 = vld [vmem:[#allocation8 + $0x98] sm:$0xff]
    %v259 = vld [vmem:[#allocation8 + $0xa0] sm:$0xff]
    %v260 = vld [vmem:[#allocation8 + $0xa8] sm:$0xff]
    %v261 = vld [vmem:[#allocation8 + $0xb0] sm:$0xff]
    %v262 = vld [vmem:[#allocation8 + $0xb8] sm:$0xff]
    %v263 = vld [vmem:[#allocation8 + $0xc0] sm:$0xff]
    %v264 = vld [vmem:[#allocation8 + $0xc8] sm:$0xff]
    %v265 = vld [vmem:[#allocation8 + $0xd0] sm:$0xff]
    %v266 = vld [vmem:[#allocation8 + $0xd8] sm:$0xff]
    %v267 = vld [vmem:[#allocation8 + $0xe0] sm:$0xff]
    %v268 = vld [vmem:[#allocation8 + $0xe8] sm:$0xff]
    %v269 = vld [vmem:[#allocation8 + $0xf0] sm:$0xff]
    %v270 = vld [vmem:[#allocation8 + $0xf8] sm:$0xff]
    %v271 = vld [vmem:[#allocation8 + $0x100] sm:$0xff]
    %v272 = vld [vmem:[#allocation8 + $0x108] sm:$0xff]
    %v273 = vld [vmem:[#allocation8 + $0x110] sm:$0xff]
    %v274 = vld [vmem:[#allocation8 + $0x118] sm:$0xff]
    %v275 = vld [vmem:[#allocation8 + $0x120] sm:$0xff]
    %v276 = vld [vmem:[#allocation8 + $0x128] sm:$0xff]
    %v277 = vld [vmem:[#allocation8 + $0x130] sm:$0xff]
    %v278 = vld [vmem:[#allocation8 + $0x138] sm:$0xff]
    %v279 = vld [vmem:[#allocation8 + $0x140] sm:$0xff]
    %v280 = vld [vmem:[#allocation8 + $0x148] sm:$0xff]
    %v281 = vld [vmem:[#allocation8 + $0x150] sm:$0xff]
    %v282 = vld [vmem:[#allocation8 + $0x158] sm:$0xff]
    %v283 = vld [vmem:[#allocation8 + $0x160] sm:$0xff]
    %v284 = vld [vmem:[#allocation8 + $0x168] sm:$0xff]
    %v285 = vld [vmem:[#allocation8 + $0x170] sm:$0xff]
    %v286 = vld [vmem:[#allocation8 + $0x178] sm:$0xff]
    %287 = vmatprep.subr.mxu0 %v240
    %288 = vmatpush1.msra.mxu0 %v239
    %289 = vmatprep.subr.mxu0 %v243
    %290 = vmatpush1.msra.mxu0 %v242
    %291 = vmatprep.subr.mxu0 %v246
    %292 = vmatpush1.msra.mxu0 %v245
    %293 = vmatprep.subr.mxu0 %v249
    %294 = vmatpush1.msra.mxu0 %v248
    %295 = vmatprep.subr.mxu0 %v252
    %296 = vmatpush1.msra.mxu0 %v251
    %297 = vmatprep.subr.mxu0 %v255
    %298 = vmatpush1.msra.mxu0 %v254
    %299 = vmatprep.subr.mxu0 %v258
    %300 = vmatpush1.msra.mxu0 %v257
    %301 = vmatprep.subr.mxu0 %v261
    %302 = vmatpush1.msra.mxu0 %v260
    %303 = vmatprep.subr.mxu0 %v264
    %304 = vmatpush1.msra.mxu0 %v263
    %305 = vmatprep.subr.mxu0 %v267
    %306 = vmatpush1.msra.mxu0 %v266
    %307 = vmatprep.subr.mxu0 %v270
    %308 = vmatpush1.msra.mxu0 %v269
    %309 = vmatprep.subr.mxu0 %v273
    %310 = vmatpush1.msra.mxu0 %v272
    %311 = vmatprep.subr.mxu0 %v276
    %312 = vmatpush1.msra.mxu0 %v275
    %313 = vmatprep.subr.mxu0 %v279
    %314 = vmatpush1.msra.mxu0 %v278
    %315 = vmatprep.subr.mxu0 %v282
    %316 = vmatpush1.msra.mxu0 %v281
    %317 = vmatprep.subr.mxu0 %v285
    %318 = vmatpush1.msra.mxu0 %v284
    %319 = vmatprep.subr.mxu0 0.0
    %320 = vmatpush1.msra.mxu0 0.0
    %321 = vmatprep.subr.mxu0 0.0
    %322 = vmatpush1.msra.mxu0 0.0
    %323 = vmatprep.subr.mxu0 0.0
    %324 = vmatpush1.msra.mxu0 0.0
    %325 = vmatprep.subr.mxu0 0.0
    %326 = vmatpush1.msra.mxu0 0.0
    %327 = vmatprep.subr.mxu0 0.0
    %328 = vmatpush1.msra.mxu0 0.0
    %329 = vmatprep.subr.mxu0 0.0
    %330 = vmatpush1.msra.mxu0 0.0
    %331 = vmatprep.subr.mxu0 0.0
    %332 = vmatpush1.msra.mxu0 0.0
    %333 = vmatprep.subr.mxu0 0.0
    %334 = vmatpush1.msra.mxu0 0.0
    %335 = vmatprep.subr.mxu0 0.0
    %336 = vmatpush1.msra.mxu0 0.0
    %337 = vmatprep.subr.mxu0 0.0
    %338 = vmatpush1.msra.mxu0 0.0
    %339 = vmatprep.subr.mxu0 0.0
    %340 = vmatpush1.msra.mxu0 0.0
    %341 = vmatprep.subr.mxu0 0.0
    %342 = vmatpush1.msra.mxu0 0.0
    %343 = vmatprep.subr.mxu0 0.0
    %344 = vmatpush1.msra.mxu0 0.0
    %345 = vmatprep.subr.mxu0 0.0
    %346 = vmatpush1.msra.mxu0 0.0
    %347 = vmatprep.subr.mxu0 0.0
    %348 = vmatpush1.msra.mxu0 0.0
    %349 = vmatprep.subr.mxu0 0.0
    %350 = vmatpush1.msra.mxu0 0.0
    %351 = vmatprep.mubr.f32.mxu0 0.0
    %352 = vmatmul.mubr.f32.gmra.mrb[0].mxu0 %v89
    %v353 = vpop.f32.mrb[0].mxu0
    %v354 = vadd.f32 0.0, %v353
    %v355 = vpop.f32.mrb[0].mxu0
    %v356 = vadd.f32 0.0, %v355
    %357 = vdwg.mxu0
    %358 = vmatprep.subr.mxu0 0.0
    %359 = vmatpush1.msra.mxu0 %v241
    %360 = vmatprep.subr.mxu0 0.0
    %361 = vmatpush1.msra.mxu0 %v244
    %362 = vmatprep.subr.mxu0 0.0
    %363 = vmatpush1.msra.mxu0 %v247
    %364 = vmatprep.subr.mxu0 0.0
    %365 = vmatpush1.msra.mxu0 %v250
    %366 = vmatprep.subr.mxu0 0.0
    %367 = vmatpush1.msra.mxu0 %v253
    %368 = vmatprep.subr.mxu0 0.0
    %369 = vmatpush1.msra.mxu0 %v256
    %370 = vmatprep.subr.mxu0 0.0
    %371 = vmatpush1.msra.mxu0 %v259
    %372 = vmatprep.subr.mxu0 0.0
    %373 = vmatpush1.msra.mxu0 %v262
    %374 = vmatprep.subr.mxu0 0.0
    %375 = vmatpush1.msra.mxu0 %v265
    %376 = vmatprep.subr.mxu0 0.0
    %377 = vmatpush1.msra.mxu0 %v268
    %378 = vmatprep.subr.mxu0 0.0
    %379 = vmatpush1.msra.mxu0 %v271
    %380 = vmatprep.subr.mxu0 0.0
    %381 = vmatpush1.msra.mxu0 %v274
    %382 = vmatprep.subr.mxu0 0.0
    %383 = vmatpush1.msra.mxu0 %v277
    %384 = vmatprep.subr.mxu0 0.0
    %385 = vmatpush1.msra.mxu0 %v280
    %386 = vmatprep.subr.mxu0 0.0
    %387 = vmatpush1.msra.mxu0 %v283
    %388 = vmatprep.subr.mxu0 0.0
    %389 = vmatpush1.msra.mxu0 %v286
    %390 = vmatprep.subr.mxu0 0.0
    %391 = vmatpush1.msra.mxu0 0.0
    %392 = vmatprep.subr.mxu0 0.0
    %393 = vmatpush1.msra.mxu0 0.0
    %394 = vmatprep.subr.mxu0 0.0
    %395 = vmatpush1.msra.mxu0 0.0
    %396 = vmatprep.subr.mxu0 0.0
    %397 = vmatpush1.msra.mxu0 0.0
    %398 = vmatprep.subr.mxu0 0.0
    %399 = vmatpush1.msra.mxu0 0.0
    %400 = vmatprep.subr.mxu0 0.0
    %401 = vmatpush1.msra.mxu0 0.0
    %402 = vmatprep.subr.mxu0 0.0
    %403 = vmatpush1.msra.mxu0 0.0
    %404 = vmatprep.subr.mxu0 0.0
    %405 = vmatpush1.msra.mxu0 0.0
    %406 = vmatprep.subr.mxu0 0.0
    %407 = vmatpush1.msra.mxu0 0.0
    %408 = vmatprep.subr.mxu0 0.0
    %409 = vmatpush1.msra.mxu0 0.0
    %410 = vmatprep.subr.mxu0 0.0
    %411 = vmatpush1.msra.mxu0 0.0
    %412 = vmatprep.subr.mxu0 0.0
    %413 = vmatpush1.msra.mxu0 0.0
    %414 = vmatprep.subr.mxu0 0.0
    %415 = vmatpush1.msra.mxu0 0.0
    %416 = vmatprep.subr.mxu0 0.0
    %417 = vmatpush1.msra.mxu0 0.0
    %418 = vmatprep.subr.mxu0 0.0
    %419 = vmatpush1.msra.mxu0 0.0
    %420 = vmatprep.subr.mxu0 0.0
    %421 = vmatpush1.msra.mxu0 0.0
    %422 = vmatprep.mubr.f32.mxu0 0.0
    %423 = vmatmul.mubr.f32.gmra.mrb[0].mxu0 %v89
    %v424 = vpop.f32.mrb[0].mxu0
    %v425 = vadd.f32 0.0, %v424
    %v426 = vpop.f32.mrb[0].mxu0
    %427 = vdwg.mxu0
    %v428 = vadd.f32 %v165, %v354
    %v429 = vxor.u32 %v428, 2147483648
    %v430 = vmul.f32 %v429, 1.442695
    %v431 = vpow.pop %v430
    %v432 = vadd.f32 %v431, 1.0
    %v433 = vrcp.pop %v432
    %v434 = vmul.f32 1.0, %v433
    %v435 = vadd.f32 %v167, %v356
    %v436 = vxor.u32 %v435, 2147483648
    %v437 = vmul.f32 %v436, 1.442695
    %v438 = vpow.pop %v437
    %v439 = vadd.f32 %v438, 1.0
    %v440 = vrcp.pop %v439
    %v441 = vmul.f32 1.0, %v440
    %v442 = vadd.f32 %v425, %v87
    %v443 = vmul.f32 %v434, %v442
    %v444 = vadd.f32 %v236, %v443
    %v445 = vtanh.pop %v444
    %v446 = vsub.f32 %v89, %v445
    %v447 = vmul.f32 %v441, %v446
    %v448 = vadd.f32 %v445, %v447
    %449 = vst [vmem:[#allocation9] sm:$0xf] %v448
    %s450 = scalar_lea.vmem [#allocation3], 4
    %v451 = vld [vmem:[%s450] sm:$0xf]
    %v452 = vld [vmem:[#allocation6] sm:$0xff]
    %v453 = vld [vmem:[#allocation6 + $0x8] sm:$0xff]
    %v454 = vld [vmem:[#allocation6 + $0x10] sm:$0xff]
    %v456 = vsel %vm94, %v451, 0
    %458 = vmatprep.subr.mxu0 %v453
    %459 = vmatpush1.msra.mxu0 %v452
    %460 = vmatprep.subr.mxu0 0.0
    %461 = vmatpush1.msra.mxu0 0.0
    %462 = vmatprep.subr.mxu0 0.0
    %463 = vmatpush1.msra.mxu0 0.0
    %464 = vmatprep.subr.mxu0 0.0
    %465 = vmatpush1.msra.mxu0 0.0
    %466 = vmatprep.subr.mxu0 0.0
    %467 = vmatpush1.msra.mxu0 0.0
    %468 = vmatprep.subr.mxu0 0.0
    %469 = vmatpush1.msra.mxu0 0.0
    %470 = vmatprep.subr.mxu0 0.0
    %471 = vmatpush1.msra.mxu0 0.0
    %472 = vmatprep.subr.mxu0 0.0
    %473 = vmatpush1.msra.mxu0 0.0
    %474 = vmatprep.subr.mxu0 0.0
    %475 = vmatpush1.msra.mxu0 0.0
    %476 = vmatprep.subr.mxu0 0.0
    %477 = vmatpush1.msra.mxu0 0.0
    %478 = vmatprep.subr.mxu0 0.0
    %479 = vmatpush1.msra.mxu0 0.0
    %480 = vmatprep.subr.mxu0 0.0
    %481 = vmatpush1.msra.mxu0 0.0
    %482 = vmatprep.subr.mxu0 0.0
    %483 = vmatpush1.msra.mxu0 0.0
    %484 = vmatprep.subr.mxu0 0.0
    %485 = vmatpush1.msra.mxu0 0.0
    %486 = vmatprep.subr.mxu0 0.0
    %487 = vmatpush1.msra.mxu0 0.0
    %488 = vmatprep.subr.mxu0 0.0
    %489 = vmatpush1.msra.mxu0 0.0
    %490 = vmatprep.subr.mxu0 0.0
    %491 = vmatpush1.msra.mxu0 0.0
    %492 = vmatprep.subr.mxu0 0.0
    %493 = vmatpush1.msra.mxu0 0.0
    %494 = vmatprep.subr.mxu0 0.0
    %495 = vmatpush1.msra.mxu0 0.0
    %496 = vmatprep.subr.mxu0 0.0
    %497 = vmatpush1.msra.mxu0 0.0
    %498 = vmatprep.subr.mxu0 0.0
    %499 = vmatpush1.msra.mxu0 0.0
    %500 = vmatprep.subr.mxu0 0.0
    %501 = vmatpush1.msra.mxu0 0.0
    %502 = vmatprep.subr.mxu0 0.0
    %503 = vmatpush1.msra.mxu0 0.0
    %504 = vmatprep.subr.mxu0 0.0
    %505 = vmatpush1.msra.mxu0 0.0
    %506 = vmatprep.subr.mxu0 0.0
    %507 = vmatpush1.msra.mxu0 0.0
    %508 = vmatprep.subr.mxu0 0.0
    %509 = vmatpush1.msra.mxu0 0.0
    %510 = vmatprep.subr.mxu0 0.0
    %511 = vmatpush1.msra.mxu0 0.0
    %512 = vmatprep.subr.mxu0 0.0
    %513 = vmatpush1.msra.mxu0 0.0
    %514 = vmatprep.subr.mxu0 0.0
    %515 = vmatpush1.msra.mxu0 0.0
    %516 = vmatprep.subr.mxu0 0.0
    %517 = vmatpush1.msra.mxu0 0.0
    %518 = vmatprep.subr.mxu0 0.0
    %519 = vmatpush1.msra.mxu0 0.0
    %520 = vmatprep.subr.mxu0 0.0
    %521 = vmatpush1.msra.mxu0 0.0
    %522 = vmatprep.mubr.f32.mxu0 0.0
    %523 = vmatmul.mubr.f32.gmra.mrb[0].mxu0 %v456
    %v524 = vpop.f32.mrb[0].mxu0
    %v525 = vadd.f32 %v70, %v524
    %v526 = vpop.f32.mrb[0].mxu0
    %v527 = vadd.f32 %v74, %v526
    %528 = vdwg.mxu0
    %529 = vmatprep.subr.mxu0 0.0
    %530 = vmatpush1.msra.mxu0 %v454
    %531 = vmatprep.subr.mxu0 0.0
    %532 = vmatpush1.msra.mxu0 0.0
    %533 = vmatprep.subr.mxu0 0.0
    %534 = vmatpush1.msra.mxu0 0.0
    %535 = vmatprep.subr.mxu0 0.0
    %536 = vmatpush1.msra.mxu0 0.0
    %537 = vmatprep.subr.mxu0 0.0
    %538 = vmatpush1.msra.mxu0 0.0
    %539 = vmatprep.subr.mxu0 0.0
    %540 = vmatpush1.msra.mxu0 0.0
    %541 = vmatprep.subr.mxu0 0.0
    %542 = vmatpush1.msra.mxu0 0.0
    %543 = vmatprep.subr.mxu0 0.0
    %544 = vmatpush1.msra.mxu0 0.0
    %545 = vmatprep.subr.mxu0 0.0
    %546 = vmatpush1.msra.mxu0 0.0
    %547 = vmatprep.subr.mxu0 0.0
    %548 = vmatpush1.msra.mxu0 0.0
    %549 = vmatprep.subr.mxu0 0.0
    %550 = vmatpush1.msra.mxu0 0.0
    %551 = vmatprep.subr.mxu0 0.0
    %552 = vmatpush1.msra.mxu0 0.0
    %553 = vmatprep.subr.mxu0 0.0
    %554 = vmatpush1.msra.mxu0 0.0
    %555 = vmatprep.subr.mxu0 0.0
    %556 = vmatpush1.msra.mxu0 0.0
    %557 = vmatprep.subr.mxu0 0.0
    %558 = vmatpush1.msra.mxu0 0.0
    %559 = vmatprep.subr.mxu0 0.0
    %560 = vmatpush1.msra.mxu0 0.0
    %561 = vmatprep.subr.mxu0 0.0
    %562 = vmatpush1.msra.mxu0 0.0
    %563 = vmatprep.subr.mxu0 0.0
    %564 = vmatpush1.msra.mxu0 0.0
    %565 = vmatprep.subr.mxu0 0.0
    %566 = vmatpush1.msra.mxu0 0.0
    %567 = vmatprep.subr.mxu0 0.0
    %568 = vmatpush1.msra.mxu0 0.0
    %569 = vmatprep.subr.mxu0 0.0
    %570 = vmatpush1.msra.mxu0 0.0
    %571 = vmatprep.subr.mxu0 0.0
    %572 = vmatpush1.msra.mxu0 0.0
    %573 = vmatprep.subr.mxu0 0.0
    %574 = vmatpush1.msra.mxu0 0.0
    %575 = vmatprep.subr.mxu0 0.0
    %576 = vmatpush1.msra.mxu0 0.0
    %577 = vmatprep.subr.mxu0 0.0
    %578 = vmatpush1.msra.mxu0 0.0
    %579 = vmatprep.subr.mxu0 0.0
    %580 = vmatpush1.msra.mxu0 0.0
    %581 = vmatprep.subr.mxu0 0.0
    %582 = vmatpush1.msra.mxu0 0.0
    %583 = vmatprep.subr.mxu0 0.0
    %584 = vmatpush1.msra.mxu0 0.0
    %585 = vmatprep.subr.mxu0 0.0
    %586 = vmatpush1.msra.mxu0 0.0
    %587 = vmatprep.subr.mxu0 0.0
    %588 = vmatpush1.msra.mxu0 0.0
    %589 = vmatprep.subr.mxu0 0.0
    %590 = vmatpush1.msra.mxu0 0.0
    %591 = vmatprep.subr.mxu0 0.0
    %592 = vmatpush1.msra.mxu0 0.0
    %593 = vmatprep.mubr.f32.mxu0 0.0
    %594 = vmatmul.mubr.f32.gmra.mrb[0].mxu0 %v456
    %v595 = vpop.f32.mrb[0].mxu0
    %v596 = vadd.f32 %v78, %v595
    %v597 = vpop.f32.mrb[0].mxu0
    %598 = vdwg.mxu0
    %v599 = vld [vmem:[#allocation8] sm:$0xff]
    %v600 = vld [vmem:[#allocation8 + $0x8] sm:$0xff]
    %v601 = vld [vmem:[#allocation8 + $0x10] sm:$0xff]
    %v602 = vld [vmem:[#allocation8 + $0x18] sm:$0xff]
    %v603 = vld [vmem:[#allocation8 + $0x20] sm:$0xff]
    %v604 = vld [vmem:[#allocation8 + $0x28] sm:$0xff]
    %v605 = vld [vmem:[#allocation8 + $0x30] sm:$0xff]
    %v606 = vld [vmem:[#allocation8 + $0x38] sm:$0xff]
    %v607 = vld [vmem:[#allocation8 + $0x40] sm:$0xff]
    %v608 = vld [vmem:[#allocation8 + $0x48] sm:$0xff]
    %v609 = vld [vmem:[#allocation8 + $0x50] sm:$0xff]
    %v610 = vld [vmem:[#allocation8 + $0x58] sm:$0xff]
    %v611 = vld [vmem:[#allocation8 + $0x60] sm:$0xff]
    %v612 = vld [vmem:[#allocation8 + $0x68] sm:$0xff]
    %v613 = vld [vmem:[#allocation8 + $0x70] sm:$0xff]
    %v614 = vld [vmem:[#allocation8 + $0x78] sm:$0xff]
    %v615 = vld [vmem:[#allocation8 + $0x80] sm:$0xff]
    %v616 = vld [vmem:[#allocation8 + $0x88] sm:$0xff]
    %v617 = vld [vmem:[#allocation8 + $0x90] sm:$0xff]
    %v618 = vld [vmem:[#allocation8 + $0x98] sm:$0xff]
    %v619 = vld [vmem:[#allocation8 + $0xa0] sm:$0xff]
    %v620 = vld [vmem:[#allocation8 + $0xa8] sm:$0xff]
    %v621 = vld [vmem:[#allocation8 + $0xb0] sm:$0xff]
    %v622 = vld [vmem:[#allocation8 + $0xb8] sm:$0xff]
    %v623 = vld [vmem:[#allocation8 + $0xc0] sm:$0xff]
    %v624 = vld [vmem:[#allocation8 + $0xc8] sm:$0xff]
    %v625 = vld [vmem:[#allocation8 + $0xd0] sm:$0xff]
    %v626 = vld [vmem:[#allocation8 + $0xd8] sm:$0xff]
    %v627 = vld [vmem:[#allocation8 + $0xe0] sm:$0xff]
    %v628 = vld [vmem:[#allocation8 + $0xe8] sm:$0xff]
    %v629 = vld [vmem:[#allocation8 + $0xf0] sm:$0xff]
    %v630 = vld [vmem:[#allocation8 + $0xf8] sm:$0xff]
    %v631 = vld [vmem:[#allocation8 + $0x100] sm:$0xff]
    %v632 = vld [vmem:[#allocation8 + $0x108] sm:$0xff]
    %v633 = vld [vmem:[#allocation8 + $0x110] sm:$0xff]
    %v634 = vld [vmem:[#allocation8 + $0x118] sm:$0xff]
    %v635 = vld [vmem:[#allocation8 + $0x120] sm:$0xff]
    %v636 = vld [vmem:[#allocation8 + $0x128] sm:$0xff]
    %v637 = vld [vmem:[#allocation8 + $0x130] sm:$0xff]
    %v638 = vld [vmem:[#allocation8 + $0x138] sm:$0xff]
    %v639 = vld [vmem:[#allocation8 + $0x140] sm:$0xff]
    %v640 = vld [vmem:[#allocation8 + $0x148] sm:$0xff]
    %v641 = vld [vmem:[#allocation8 + $0x150] sm:$0xff]
    %v642 = vld [vmem:[#allocation8 + $0x158] sm:$0xff]
    %v643 = vld [vmem:[#allocation8 + $0x160] sm:$0xff]
    %v644 = vld [vmem:[#allocation8 + $0x168] sm:$0xff]
    %v645 = vld [vmem:[#allocation8 + $0x170] sm:$0xff]
    %v646 = vld [vmem:[#allocation8 + $0x178] sm:$0xff]
    %647 = vmatprep.subr.mxu0 %v600
    %648 = vmatpush1.msra.mxu0 %v599
    %649 = vmatprep.subr.mxu0 %v603
    %650 = vmatpush1.msra.mxu0 %v602
    %651 = vmatprep.subr.mxu0 %v606
    %652 = vmatpush1.msra.mxu0 %v605
    %653 = vmatprep.subr.mxu0 %v609
    %654 = vmatpush1.msra.mxu0 %v608
    %655 = vmatprep.subr.mxu0 %v612
    %656 = vmatpush1.msra.mxu0 %v611
    %657 = vmatprep.subr.mxu0 %v615
    %658 = vmatpush1.msra.mxu0 %v614
    %659 = vmatprep.subr.mxu0 %v618
    %660 = vmatpush1.msra.mxu0 %v617
    %661 = vmatprep.subr.mxu0 %v621
    %662 = vmatpush1.msra.mxu0 %v620
    %663 = vmatprep.subr.mxu0 %v624
    %664 = vmatpush1.msra.mxu0 %v623
    %665 = vmatprep.subr.mxu0 %v627
    %666 = vmatpush1.msra.mxu0 %v626
    %667 = vmatprep.subr.mxu0 %v630
    %668 = vmatpush1.msra.mxu0 %v629
    %669 = vmatprep.subr.mxu0 %v633
    %670 = vmatpush1.msra.mxu0 %v632
    %671 = vmatprep.subr.mxu0 %v636
    %672 = vmatpush1.msra.mxu0 %v635
    %673 = vmatprep.subr.mxu0 %v639
    %674 = vmatpush1.msra.mxu0 %v638
    %675 = vmatprep.subr.mxu0 %v642
    %676 = vmatpush1.msra.mxu0 %v641
    %677 = vmatprep.subr.mxu0 %v645
    %678 = vmatpush1.msra.mxu0 %v644
    %679 = vmatprep.subr.mxu0 0.0
    %680 = vmatpush1.msra.mxu0 0.0
    %681 = vmatprep.subr.mxu0 0.0
    %682 = vmatpush1.msra.mxu0 0.0
    %683 = vmatprep.subr.mxu0 0.0
    %684 = vmatpush1.msra.mxu0 0.0
    %685 = vmatprep.subr.mxu0 0.0
    %686 = vmatpush1.msra.mxu0 0.0
    %687 = vmatprep.subr.mxu0 0.0
    %688 = vmatpush1.msra.mxu0 0.0
    %689 = vmatprep.subr.mxu0 0.0
    %690 = vmatpush1.msra.mxu0 0.0
    %691 = vmatprep.subr.mxu0 0.0
    %692 = vmatpush1.msra.mxu0 0.0
    %693 = vmatprep.subr.mxu0 0.0
    %694 = vmatpush1.msra.mxu0 0.0
    %695 = vmatprep.subr.mxu0 0.0
    %696 = vmatpush1.msra.mxu0 0.0
    %697 = vmatprep.subr.mxu0 0.0
    %698 = vmatpush1.msra.mxu0 0.0
    %699 = vmatprep.subr.mxu0 0.0
    %700 = vmatpush1.msra.mxu0 0.0
    %701 = vmatprep.subr.mxu0 0.0
    %702 = vmatpush1.msra.mxu0 0.0
    %703 = vmatprep.subr.mxu0 0.0
    %704 = vmatpush1.msra.mxu0 0.0
    %705 = vmatprep.subr.mxu0 0.0
    %706 = vmatpush1.msra.mxu0 0.0
    %707 = vmatprep.subr.mxu0 0.0
    %708 = vmatpush1.msra.mxu0 0.0
    %709 = vmatprep.subr.mxu0 0.0
    %710 = vmatpush1.msra.mxu0 0.0
    %711 = vmatprep.mubr.f32.mxu0 0.0
    %712 = vmatmul.mubr.f32.gmra.mrb[0].mxu0 %v448
    %v713 = vpop.f32.mrb[0].mxu0
    %v714 = vadd.f32 0.0, %v713
    %v715 = vpop.f32.mrb[0].mxu0
    %v716 = vadd.f32 0.0, %v715
    %717 = vdwg.mxu0
    %718 = vmatprep.subr.mxu0 0.0
    %719 = vmatpush1.msra.mxu0 %v601
    %720 = vmatprep.subr.mxu0 0.0
    %721 = vmatpush1.msra.mxu0 %v604
    %722 = vmatprep.subr.mxu0 0.0
    %723 = vmatpush1.msra.mxu0 %v607
    %724 = vmatprep.subr.mxu0 0.0
    %725 = vmatpush1.msra.mxu0 %v610
    %726 = vmatprep.subr.mxu0 0.0
    %727 = vmatpush1.msra.mxu0 %v613
    %728 = vmatprep.subr.mxu0 0.0
    %729 = vmatpush1.msra.mxu0 %v616
    %730 = vmatprep.subr.mxu0 0.0
    %731 = vmatpush1.msra.mxu0 %v619
    %732 = vmatprep.subr.mxu0 0.0
    %733 = vmatpush1.msra.mxu0 %v622
    %734 = vmatprep.subr.mxu0 0.0
    %735 = vmatpush1.msra.mxu0 %v625
    %736 = vmatprep.subr.mxu0 0.0
    %737 = vmatpush1.msra.mxu0 %v628
    %738 = vmatprep.subr.mxu0 0.0
    %739 = vmatpush1.msra.mxu0 %v631
    %740 = vmatprep.subr.mxu0 0.0
    %741 = vmatpush1.msra.mxu0 %v634
    %742 = vmatprep.subr.mxu0 0.0
    %743 = vmatpush1.msra.mxu0 %v637
    %744 = vmatprep.subr.mxu0 0.0
    %745 = vmatpush1.msra.mxu0 %v640
    %746 = vmatprep.subr.mxu0 0.0
    %747 = vmatpush1.msra.mxu0 %v643
    %748 = vmatprep.subr.mxu0 0.0
    %749 = vmatpush1.msra.mxu0 %v646
    %750 = vmatprep.subr.mxu0 0.0
    %751 = vmatpush1.msra.mxu0 0.0
    %752 = vmatprep.subr.mxu0 0.0
    %753 = vmatpush1.msra.mxu0 0.0
    %754 = vmatprep.subr.mxu0 0.0
    %755 = vmatpush1.msra.mxu0 0.0
    %756 = vmatprep.subr.mxu0 0.0
    %757 = vmatpush1.msra.mxu0 0.0
    %758 = vmatprep.subr.mxu0 0.0
    %759 = vmatpush1.msra.mxu0 0.0
    %760 = vmatprep.subr.mxu0 0.0
    %761 = vmatpush1.msra.mxu0 0.0
    %762 = vmatprep.subr.mxu0 0.0
    %763 = vmatpush1.msra.mxu0 0.0
    %764 = vmatprep.subr.mxu0 0.0
    %765 = vmatpush1.msra.mxu0 0.0
    %766 = vmatprep.subr.mxu0 0.0
    %767 = vmatpush1.msra.mxu0 0.0
    %768 = vmatprep.subr.mxu0 0.0
    %769 = vmatpush1.msra.mxu0 0.0
    %770 = vmatprep.subr.mxu0 0.0
    %771 = vmatpush1.msra.mxu0 0.0
    %772 = vmatprep.subr.mxu0 0.0
    %773 = vmatpush1.msra.mxu0 0.0
    %774 = vmatprep.subr.mxu0 0.0
    %775 = vmatpush1.msra.mxu0 0.0
    %776 = vmatprep.subr.mxu0 0.0
    %777 = vmatpush1.msra.mxu0 0.0
    %778 = vmatprep.subr.mxu0 0.0
    %779 = vmatpush1.msra.mxu0 0.0
    %780 = vmatprep.subr.mxu0 0.0
    %781 = vmatpush1.msra.mxu0 0.0
    %782 = vmatprep.mubr.f32.mxu0 0.0
    %783 = vmatmul.mubr.f32.gmra.mrb[0].mxu0 %v448
    %v784 = vpop.f32.mrb[0].mxu0
    %v785 = vadd.f32 0.0, %v784
    %v786 = vpop.f32.mrb[0].mxu0
    %787 = vdwg.mxu0
    %v788 = vadd.f32 %v525, %v714
    %v789 = vxor.u32 %v788, 2147483648
    %v790 = vmul.f32 %v789, 1.442695
    %v791 = vpow.pop %v790
    %v792 = vadd.f32 %v791, 1.0
    %v793 = vrcp.pop %v792
    %v794 = vmul.f32 1.0, %v793
    %v795 = vadd.f32 %v527, %v716
    %v796 = vxor.u32 %v795, 2147483648
    %v797 = vmul.f32 %v796, 1.442695
    %v798 = vpow.pop %v797
    %v799 = vadd.f32 %v798, 1.0
    %v800 = vrcp.pop %v799
    %v801 = vmul.f32 1.0, %v800
    %v802 = vadd.f32 %v785, %v87
    %v803 = vmul.f32 %v794, %v802
    %v804 = vadd.f32 %v596, %v803
    %v805 = vtanh.pop %v804
    %v806 = vsub.f32 %v448, %v805
    %v807 = vmul.f32 %v801, %v806
    %v808 = vadd.f32 %v805, %v807
    %s809 = scalar_lea.vmem [#allocation9], 4
    %810 = vst [vmem:[%s809] sm:$0xf] %v808
    %s811 = scalar_lea.vmem [#allocation3], 8
    %v812 = vld [vmem:[%s811] sm:$0xf]
    %v813 = vld [vmem:[#allocation6] sm:$0xff]
    %v814 = vld [vmem:[#allocation6 + $0x8] sm:$0xff]
    %v815 = vld [vmem:[#allocation6 + $0x10] sm:$0xff]
    %v817 = vsel %vm94, %v812, 0
    %819 = vmatprep.subr.mxu0 %v814
    %820 = vmatpush1.msra.mxu0 %v813
    %821 = vmatprep.subr.mxu0 0.0
    %822 = vmatpush1.msra.mxu0 0.0
    %823 = vmatprep.subr.mxu0 0.0
    %824 = vmatpush1.msra.mxu0 0.0
    %825 = vmatprep.subr.mxu0 0.0
    %826 = vmatpush1.msra.mxu0 0.0
    %827 = vmatprep.subr.mxu0 0.0
    %828 = vmatpush1.msra.mxu0 0.0
    %829 = vmatprep.subr.mxu0 0.0
    %830 = vmatpush1.msra.mxu0 0.0
    %831 = vmatprep.subr.mxu0 0.0
    %832 = vmatpush1.msra.mxu0 0.0
    %833 = vmatprep.subr.mxu0 0.0
    %834 = vmatpush1.msra.mxu0 0.0
    %835 = vmatprep.subr.mxu0 0.0
    %836 = vmatpush1.msra.mxu0 0.0
    %837 = vmatprep.subr.mxu0 0.0
    %838 = vmatpush1.msra.mxu0 0.0
    %839 = vmatprep.subr.mxu0 0.0
    %840 = vmatpush1.msra.mxu0 0.0
    %841 = vmatprep.subr.mxu0 0.0
    %842 = vmatpush1.msra.mxu0 0.0
    %843 = vmatprep.subr.mxu0 0.0
    %844 = vmatpush1.msra.mxu0 0.0
    %845 = vmatprep.subr.mxu0 0.0
    %846 = vmatpush1.msra.mxu0 0.0
    %847 = vmatprep.subr.mxu0 0.0
    %848 = vmatpush1.msra.mxu0 0.0
    %849 = vmatprep.subr.mxu0 0.0
    %850 = vmatpush1.msra.mxu0 0.0
    %851 = vmatprep.subr.mxu0 0.0
    %852 = vmatpush1.msra.mxu0 0.0
    %853 = vmatprep.subr.mxu0 0.0
    %854 = vmatpush1.msra.mxu0 0.0
    %855 = vmatprep.subr.mxu0 0.0
    %856 = vmatpush1.msra.mxu0 0.0
    %857 = vmatprep.subr.mxu0 0.0
    %858 = vmatpush1.msra.mxu0 0.0
    %859 = vmatprep.subr.mxu0 0.0
    %860 = vmatpush1.msra.mxu0 0.0
    %861 = vmatprep.subr.mxu0 0.0
    %862 = vmatpush1.msra.mxu0 0.0
    %863 = vmatprep.subr.mxu0 0.0
    %864 = vmatpush1.msra.mxu0 0.0
    %865 = vmatprep.subr.mxu0 0.0
    %866 = vmatpush1.msra.mxu0 0.0
    %867 = vmatprep.subr.mxu0 0.0
    %868 = vmatpush1.msra.mxu0 0.0
    %869 = vmatprep.subr.mxu0 0.0
    %870 = vmatpush1.msra.mxu0 0.0
    %871 = vmatprep.subr.mxu0 0.0
    %872 = vmatpush1.msra.mxu0 0.0
    %873 = vmatprep.subr.mxu0 0.0
    %874 = vmatpush1.msra.mxu0 0.0
    %875 = vmatprep.subr.mxu0 0.0
    %876 = vmatpush1.msra.mxu0 0.0
    %877 = vmatprep.subr.mxu0 0.0
    %878 = vmatpush1.msra.mxu0 0.0
    %879 = vmatprep.subr.mxu0 0.0
    %880 = vmatpush1.msra.mxu0 0.0
    %881 = vmatprep.subr.mxu0 0.0
    %882 = vmatpush1.msra.mxu0 0.0
    %883 = vmatprep.mubr.f32.mxu0 0.0
    %884 = vmatmul.mubr.f32.gmra.mrb[0].mxu0 %v817
    %v885 = vpop.f32.mrb[0].mxu0
    %v886 = vadd.f32 %v70, %v885
    %v887 = vpop.f32.mrb[0].mxu0
    %v888 = vadd.f32 %v74, %v887
    %889 = vdwg.mxu0
    %890 = vmatprep.subr.mxu0 0.0
    %891 = vmatpush1.msra.mxu0 %v815
    %892 = vmatprep.subr.mxu0 0.0
    %893 = vmatpush1.msra.mxu0 0.0
    %894 = vmatprep.subr.mxu0 0.0
    %895 = vmatpush1.msra.mxu0 0.0
    %896 = vmatprep.subr.mxu0 0.0
    %897 = vmatpush1.msra.mxu0 0.0
    %898 = vmatprep.subr.mxu0 0.0
    %899 = vmatpush1.msra.mxu0 0.0
    %900 = vmatprep.subr.mxu0 0.0
    %901 = vmatpush1.msra.mxu0 0.0
    %902 = vmatprep.subr.mxu0 0.0
    %903 = vmatpush1.msra.mxu0 0.0
    %904 = vmatprep.subr.mxu0 0.0
    %905 = vmatpush1.msra.mxu0 0.0
    %906 = vmatprep.subr.mxu0 0.0
    %907 = vmatpush1.msra.mxu0 0.0
    %908 = vmatprep.subr.mxu0 0.0
    %909 = vmatpush1.msra.mxu0 0.0
    %910 = vmatprep.subr.mxu0 0.0
    %911 = vmatpush1.msra.mxu0 0.0
    %912 = vmatprep.subr.mxu0 0.0
    %913 = vmatpush1.msra.mxu0 0.0
    %914 = vmatprep.subr.mxu0 0.0
    %915 = vmatpush1.msra.mxu0 0.0
    %916 = vmatprep.subr.mxu0 0.0
    %917 = vmatpush1.msra.mxu0 0.0
    %918 = vmatprep.subr.mxu0 0.0
    %919 = vmatpush1.msra.mxu0 0.0
    %920 = vmatprep.subr.mxu0 0.0
    %921 = vmatpush1.msra.mxu0 0.0
    %922 = vmatprep.subr.mxu0 0.0
    %923 = vmatpush1.msra.mxu0 0.0
    %924 = vmatprep.subr.mxu0 0.0
    %925 = vmatpush1.msra.mxu0 0.0
    %926 = vmatprep.subr.mxu0 0.0
    %927 = vmatpush1.msra.mxu0 0.0
    %928 = vmatprep.subr.mxu0 0.0
    %929 = vmatpush1.msra.mxu0 0.0
    %930 = vmatprep.subr.mxu0 0.0
    %931 = vmatpush1.msra.mxu0 0.0
    %932 = vmatprep.subr.mxu0 0.0
    %933 = vmatpush1.msra.mxu0 0.0
    %934 = vmatprep.subr.mxu0 0.0
    %935 = vmatpush1.msra.mxu0 0.0
    %936 = vmatprep.subr.mxu0 0.0
    %937 = vmatpush1.msra.mxu0 0.0
    %938 = vmatprep.subr.mxu0 0.0
    %939 = vmatpush1.msra.mxu0 0.0
    %940 = vmatprep.subr.mxu0 0.0
    %941 = vmatpush1.msra.mxu0 0.0
    %942 = vmatprep.subr.mxu0 0.0
    %943 = vmatpush1.msra.mxu0 0.0
    %944 = vmatprep.subr.mxu0 0.0
    %945 = vmatpush1.msra.mxu0 0.0
    %946 = vmatprep.subr.mxu0 0.0
    %947 = vmatpush1.msra.mxu0 0.0
    %948 = vmatprep.subr.mxu0 0.0
    %949 = vmatpush1.msra.mxu0 0.0
    %950 = vmatprep.subr.mxu0 0.0
    %951 = vmatpush1.msra.mxu0 0.0
    %952 = vmatprep.subr.mxu0 0.0
    %953 = vmatpush1.msra.mxu0 0.0
    %954 = vmatprep.mubr.f32.mxu0 0.0
    %955 = vmatmul.mubr.f32.gmra.mrb[0].mxu0 %v817
    %v956 = vpop.f32.mrb[0].mxu0
    %v957 = vadd.f32 %v78, %v956
    %v958 = vpop.f32.mrb[0].mxu0
    %959 = vdwg.mxu0
    %v960 = vld [vmem:[#allocation8] sm:$0xff]
    %v961 = vld [vmem:[#allocation8 + $0x8] sm:$0xff]
    %v962 = vld [vmem:[#allocation8 + $0x10] sm:$0xff]
    %v963 = vld [vmem:[#allocation8 + $0x18] sm:$0xff]
    %v964 = vld [vmem:[#allocation8 + $0x20] sm:$0xff]
    %v965 = vld [vmem:[#allocation8 + $0x28] sm:$0xff]
    %v966 = vld [vmem:[#allocation8 + $0x30] sm:$0xff]
    %v967 = vld [vmem:[#allocation8 + $0x38] sm:$0xff]
    %v968 = vld [vmem:[#allocation8 + $0x40] sm:$0xff]
    %v969 = vld [vmem:[#allocation8 + $0x48] sm:$0xff]
    %v970 = vld [vmem:[#allocation8 + $0x50] sm:$0xff]
    %v971 = vld [vmem:[#allocation8 + $0x58] sm:$0xff]
    %v972 = vld [vmem:[#allocation8 + $0x60] sm:$0xff]
    %v973 = vld [vmem:[#allocation8 + $0x68] sm:$0xff]
    %v974 = vld [vmem:[#allocation8 + $0x70] sm:$0xff]
    %v975 = vld [vmem:[#allocation8 + $0x78] sm:$0xff]
    %v976 = vld [vmem:[#allocation8 + $0x80] sm:$0xff]
    %v977 = vld [vmem:[#allocation8 + $0x88] sm:$0xff]
    %v978 = vld [vmem:[#allocation8 + $0x90] sm:$0xff]
    %v979 = vld [vmem:[#allocation8 + $0x98] sm:$0xff]
    %v980 = vld [vmem:[#allocation8 + $0xa0] sm:$0xff]
    %v981 = vld [vmem:[#allocation8 + $0xa8] sm:$0xff]
    %v982 = vld [vmem:[#allocation8 + $0xb0] sm:$0xff]
    %v983 = vld [vmem:[#allocation8 + $0xb8] sm:$0xff]
    %v984 = vld [vmem:[#allocation8 + $0xc0] sm:$0xff]
    %v985 = vld [vmem:[#allocation8 + $0xc8] sm:$0xff]
    %v986 = vld [vmem:[#allocation8 + $0xd0] sm:$0xff]
    %v987 = vld [vmem:[#allocation8 + $0xd8] sm:$0xff]
    %v988 = vld [vmem:[#allocation8 + $0xe0] sm:$0xff]
    %v989 = vld [vmem:[#allocation8 + $0xe8] sm:$0xff]
    %v990 = vld [vmem:[#allocation8 + $0xf0] sm:$0xff]
    %v991 = vld [vmem:[#allocation8 + $0xf8] sm:$0xff]
    %v992 = vld [vmem:[#allocation8 + $0x100] sm:$0xff]
    %v993 = vld [vmem:[#allocation8 + $0x108] sm:$0xff]
    %v994 = vld [vmem:[#allocation8 + $0x110] sm:$0xff]
    %v995 = vld [vmem:[#allocation8 + $0x118] sm:$0xff]
    %v996 = vld [vmem:[#allocation8 + $0x120] sm:$0xff]
    %v997 = vld [vmem:[#allocation8 + $0x128] sm:$0xff]
    %v998 = vld [vmem:[#allocation8 + $0x130] sm:$0xff]
    %v999 = vld [vmem:[#allocation8 + $0x138] sm:$0xff]
    %v1000 = vld [vmem:[#allocation8 + $0x140] sm:$0xff]
    %v1001 = vld [vmem:[#allocation8 + $0x148] sm:$0xff]
    %v1002 = vld [vmem:[#allocation8 + $0x150] sm:$0xff]
    %v1003 = vld [vmem:[#allocation8 + $0x158] sm:$0xff]
    %v1004 = vld [vmem:[#allocation8 + $0x160] sm:$0xff]
    %v1005 = vld [vmem:[#allocation8 + $0x168] sm:$0xff]
    %v1006 = vld [vmem:[#allocation8 + $0x170] sm:$0xff]
    %v1007 = vld [vmem:[#allocation8 + $0x178] sm:$0xff]
    %1008 = vmatprep.subr.mxu0 %v961
    %1009 = vmatpush1.msra.mxu0 %v960
    %1010 = vmatprep.subr.mxu0 %v964
    %1011 = vmatpush1.msra.mxu0 %v963
    %1012 = vmatprep.subr.mxu0 %v967
    %1013 = vmatpush1.msra.mxu0 %v966
    %1014 = vmatprep.subr.mxu0 %v970
    %1015 = vmatpush1.msra.mxu0 %v969
    %1016 = vmatprep.subr.mxu0 %v973
    %1017 = vmatpush1.msra.mxu0 %v972
    %1018 = vmatprep.subr.mxu0 %v976
    %1019 = vmatpush1.msra.mxu0 %v975
    %1020 = vmatprep.subr.mxu0 %v979
    %1021 = vmatpush1.msra.mxu0 %v978
    %1022 = vmatprep.subr.mxu0 %v982
    %1023 = vmatpush1.msra.mxu0 %v981
    %1024 = vmatprep.subr.mxu0 %v985
    %1025 = vmatpush1.msra.mxu0 %v984
    %1026 = vmatprep.subr.mxu0 %v988
    %1027 = vmatpush1.msra.mxu0 %v987
    %1028 = vmatprep.subr.mxu0 %v991
    %1029 = vmatpush1.msra.mxu0 %v990
    %1030 = vmatprep.subr.mxu0 %v994
    %1031 = vmatpush1.msra.mxu0 %v993
    %1032 = vmatprep.subr.mxu0 %v997
    %1033 = vmatpush1.msra.mxu0 %v996
    %1034 = vmatprep.subr.mxu0 %v1000
    %1035 = vmatpush1.msra.mxu0 %v999
    %1036 = vmatprep.subr.mxu0 %v1003
    %1037 = vmatpush1.msra.mxu0 %v1002
    %1038 = vmatprep.subr.mxu0 %v1006
    %1039 = vmatpush1.msra.mxu0 %v1005
    %1040 = vmatprep.subr.mxu0 0.0
    %1041 = vmatpush1.msra.mxu0 0.0
    %1042 = vmatprep.subr.mxu0 0.0
    %1043 = vmatpush1.msra.mxu0 0.0
    %1044 = vmatprep.subr.mxu0 0.0
    %1045 = vmatpush1.msra.mxu0 0.0
    %1046 = vmatprep.subr.mxu0 0.0
    %1047 = vmatpush1.msra.mxu0 0.0
    %1048 = vmatprep.subr.mxu0 0.0
    %1049 = vmatpush1.msra.mxu0 0.0
    %1050 = vmatprep.subr.mxu0 0.0
    %1051 = vmatpush1.msra.mxu0 0.0
    %1052 = vmatprep.subr.mxu0 0.0
    %1053 = vmatpush1.msra.mxu0 0.0
    %1054 = vmatprep.subr.mxu0 0.0
    %1055 = vmatpush1.msra.mxu0 0.0
    %1056 = vmatprep.subr.mxu0 0.0
    %1057 = vmatpush1.msra.mxu0 0.0
    %1058 = vmatprep.subr.mxu0 0.0
    %1059 = vmatpush1.msra.mxu0 0.0
    %1060 = vmatprep.subr.mxu0 0.0
    %1061 = vmatpush1.msra.mxu0 0.0
    %1062 = vmatprep.subr.mxu0 0.0
    %1063 = vmatpush1.msra.mxu0 0.0
    %1064 = vmatprep.subr.mxu0 0.0
    %1065 = vmatpush1.msra.mxu0 0.0
    %1066 = vmatprep.subr.mxu0 0.0
    %1067 = vmatpush1.msra.mxu0 0.0
    %1068 = vmatprep.subr.mxu0 0.0
    %1069 = vmatpush1.msra.mxu0 0.0
    %1070 = vmatprep.subr.mxu0 0.0
    %1071 = vmatpush1.msra.mxu0 0.0
    %1072 = vmatprep.mubr.f32.mxu0 0.0
    %1073 = vmatmul.mubr.f32.gmra.mrb[0].mxu0 %v808
    %v1074 = vpop.f32.mrb[0].mxu0
    %v1075 = vadd.f32 0.0, %v1074
    %v1076 = vpop.f32.mrb[0].mxu0
    %v1077 = vadd.f32 0.0, %v1076
    %1078 = vdwg.mxu0
    %1079 = vmatprep.subr.mxu0 0.0
    %1080 = vmatpush1.msra.mxu0 %v962
    %1081 = vmatprep.subr.mxu0 0.0
    %1082 = vmatpush1.msra.mxu0 %v965
    %1083 = vmatprep.subr.mxu0 0.0
    %1084 = vmatpush1.msra.mxu0 %v968
    %1085 = vmatprep.subr.mxu0 0.0
    %1086 = vmatpush1.msra.mxu0 %v971
    %1087 = vmatprep.subr.mxu0 0.0
    %1088 = vmatpush1.msra.mxu0 %v974
    %1089 = vmatprep.subr.mxu0 0.0
    %1090 = vmatpush1.msra.mxu0 %v977
    %1091 = vmatprep.subr.mxu0 0.0
    %1092 = vmatpush1.msra.mxu0 %v980
    %1093 = vmatprep.subr.mxu0 0.0
    %1094 = vmatpush1.msra.mxu0 %v983
    %1095 = vmatprep.subr.mxu0 0.0
    %1096 = vmatpush1.msra.mxu0 %v986
    %1097 = vmatprep.subr.mxu0 0.0
    %1098 = vmatpush1.msra.mxu0 %v989
    %1099 = vmatprep.subr.mxu0 0.0
    %1100 = vmatpush1.msra.mxu0 %v992
    %1101 = vmatprep.subr.mxu0 0.0
    %1102 = vmatpush1.msra.mxu0 %v995
    %1103 = vmatprep.subr.mxu0 0.0
    %1104 = vmatpush1.msra.mxu0 %v998
    %1105 = vmatprep.subr.mxu0 0.0
    %1106 = vmatpush1.msra.mxu0 %v1001
    %1107 = vmatprep.subr.mxu0 0.0
    %1108 = vmatpush1.msra.mxu0 %v1004
    %1109 = vmatprep.subr.mxu0 0.0
    %1110 = vmatpush1.msra.mxu0 %v1007
    %1111 = vmatprep.subr.mxu0 0.0
    %1112 = vmatpush1.msra.mxu0 0.0
    %1113 = vmatprep.subr.mxu0 0.0
    %1114 = vmatpush1.msra.mxu0 0.0
    %1115 = vmatprep.subr.mxu0 0.0
    %1116 = vmatpush1.msra.mxu0 0.0
    %1117 = vmatprep.subr.mxu0 0.0
    %1118 = vmatpush1.msra.mxu0 0.0
    %1119 = vmatprep.subr.mxu0 0.0
    %1120 = vmatpush1.msra.mxu0 0.0
    %1121 = vmatprep.subr.mxu0 0.0
    %1122 = vmatpush1.msra.mxu0 0.0
    %1123 = vmatprep.subr.mxu0 0.0
    %1124 = vmatpush1.msra.mxu0 0.0
    %1125 = vmatprep.subr.mxu0 0.0
    %1126 = vmatpush1.msra.mxu0 0.0
    %1127 = vmatprep.subr.mxu0 0.0
    %1128 = vmatpush1.msra.mxu0 0.0
    %1129 = vmatprep.subr.mxu0 0.0
    %1130 = vmatpush1.msra.mxu0 0.0
    %1131 = vmatprep.subr.mxu0 0.0
    %1132 = vmatpush1.msra.mxu0 0.0
    %1133 = vmatprep.subr.mxu0 0.0
    %1134 = vmatpush1.msra.mxu0 0.0
    %1135 = vmatprep.subr.mxu0 0.0
    %1136 = vmatpush1.msra.mxu0 0.0
    %1137 = vmatprep.subr.mxu0 0.0
    %1138 = vmatpush1.msra.mxu0 0.0
    %1139 = vmatprep.subr.mxu0 0.0
    %1140 = vmatpush1.msra.mxu0 0.0
    %1141 = vmatprep.subr.mxu0 0.0
    %1142 = vmatpush1.msra.mxu0 0.0
    %1143 = vmatprep.mubr.f32.mxu0 0.0
    %1144 = vmatmul.mubr.f32.gmra.mrb[0].mxu0 %v808
    %v1145 = vpop.f32.mrb[0].mxu0
    %v1146 = vadd.f32 0.0, %v1145
    %v1147 = vpop.f32.mrb[0].mxu0
    %1148 = vdwg.mxu0
    %v1149 = vadd.f32 %v886, %v1075
    %v1150 = vxor.u32 %v1149, 2147483648
    %v1151 = vmul.f32 %v1150, 1.442695
    %v1152 = vpow.pop %v1151
    %v1153 = vadd.f32 %v1152, 1.0
    %v1154 = vrcp.pop %v1153
    %v1155 = vmul.f32 1.0, %v1154
    %v1156 = vadd.f32 %v888, %v1077
    %v1157 = vxor.u32 %v1156, 2147483648
    %v1158 = vmul.f32 %v1157, 1.442695
    %v1159 = vpow.pop %v1158
    %v1160 = vadd.f32 %v1159, 1.0
    %v1161 = vrcp.pop %v1160
    %v1162 = vmul.f32 1.0, %v1161
    %v1163 = vadd.f32 %v1146, %v87
    %v1164 = vmul.f32 %v1155, %v1163
    %v1165 = vadd.f32 %v957, %v1164
    %v1166 = vtanh.pop %v1165
    %v1167 = vsub.f32 %v808, %v1166
    %v1168 = vmul.f32 %v1162, %v1167
    %v1169 = vadd.f32 %v1166, %v1168
    %s1170 = scalar_lea.vmem [#allocation9], 8
    %1171 = vst [vmem:[%s1170] sm:$0xf] %v1169
    %s1172 = scalar_lea.vmem [#allocation3], 12
    %v1173 = vld [vmem:[%s1172] sm:$0xf]
    %v1174 = vld [vmem:[#allocation6] sm:$0xff]
    %v1175 = vld [vmem:[#allocation6 + $0x8] sm:$0xff]
    %v1176 = vld [vmem:[#allocation6 + $0x10] sm:$0xff]
    %v1178 = vsel %vm94, %v1173, 0
    %1180 = vmatprep.subr.mxu0 %v1175
    %1181 = vmatpush1.msra.mxu0 %v1174
    %1182 = vmatprep.subr.mxu0 0.0
    %1183 = vmatpush1.msra.mxu0 0.0
    %1184 = vmatprep.subr.mxu0 0.0
    %1185 = vmatpush1.msra.mxu0 0.0
    %1186 = vmatprep.subr.mxu0 0.0
    %1187 = vmatpush1.msra.mxu0 0.0
    %1188 = vmatprep.subr.mxu0 0.0
    %1189 = vmatpush1.msra.mxu0 0.0
    %1190 = vmatprep.subr.mxu0 0.0
    %1191 = vmatpush1.msra.mxu0 0.0
    %1192 = vmatprep.subr.mxu0 0.0
    %1193 = vmatpush1.msra.mxu0 0.0
    %1194 = vmatprep.subr.mxu0 0.0
    %1195 = vmatpush1.msra.mxu0 0.0
    %1196 = vmatprep.subr.mxu0 0.0
    %1197 = vmatpush1.msra.mxu0 0.0
    %1198 = vmatprep.subr.mxu0 0.0
    %1199 = vmatpush1.msra.mxu0 0.0
    %1200 = vmatprep.subr.mxu0 0.0
    %1201 = vmatpush1.msra.mxu0 0.0
    %1202 = vmatprep.subr.mxu0 0.0
    %1203 = vmatpush1.msra.mxu0 0.0
    %1204 = vmatprep.subr.mxu0 0.0
    %1205 = vmatpush1.msra.mxu0 0.0
    %1206 = vmatprep.subr.mxu0 0.0
    %1207 = vmatpush1.msra.mxu0 0.0
    %1208 = vmatprep.subr.mxu0 0.0
    %1209 = vmatpush1.msra.mxu0 0.0
    %1210 = vmatprep.subr.mxu0 0.0
    %1211 = vmatpush1.msra.mxu0 0.0
    %1212 = vmatprep.subr.mxu0 0.0
    %1213 = vmatpush1.msra.mxu0 0.0
    %1214 = vmatprep.subr.mxu0 0.0
    %1215 = vmatpush1.msra.mxu0 0.0
    %1216 = vmatprep.subr.mxu0 0.0
    %1217 = vmatpush1.msra.mxu0 0.0
    %1218 = vmatprep.subr.mxu0 0.0
    %1219 = vmatpush1.msra.mxu0 0.0
    %1220 = vmatprep.subr.mxu0 0.0
    %1221 = vmatpush1.msra.mxu0 0.0
    %1222 = vmatprep.subr.mxu0 0.0
    %1223 = vmatpush1.msra.mxu0 0.0
    %1224 = vmatprep.subr.mxu0 0.0
    %1225 = vmatpush1.msra.mxu0 0.0
    %1226 = vmatprep.subr.mxu0 0.0
    %1227 = vmatpush1.msra.mxu0 0.0
    %1228 = vmatprep.subr.mxu0 0.0
    %1229 = vmatpush1.msra.mxu0 0.0
    %1230 = vmatprep.subr.mxu0 0.0
    %1231 = vmatpush1.msra.mxu0 0.0
    %1232 = vmatprep.subr.mxu0 0.0
    %1233 = vmatpush1.msra.mxu0 0.0
    %1234 = vmatprep.subr.mxu0 0.0
    %1235 = vmatpush1.msra.mxu0 0.0
    %1236 = vmatprep.subr.mxu0 0.0
    %1237 = vmatpush1.msra.mxu0 0.0
    %1238 = vmatprep.subr.mxu0 0.0
    %1239 = vmatpush1.msra.mxu0 0.0
    %1240 = vmatprep.subr.mxu0 0.0
    %1241 = vmatpush1.msra.mxu0 0.0
    %1242 = vmatprep.subr.mxu0 0.0
    %1243 = vmatpush1.msra.mxu0 0.0
    %1244 = vmatprep.mubr.f32.mxu0 0.0
    %1245 = vmatmul.mubr.f32.gmra.mrb[0].mxu0 %v1178
    %v1246 = vpop.f32.mrb[0].mxu0
    %v1247 = vadd.f32 %v70, %v1246
    %v1248 = vpop.f32.mrb[0].mxu0
    %v1249 = vadd.f32 %v74, %v1248
    %1250 = vdwg.mxu0
    %1251 = vmatprep.subr.mxu0 0.0
    %1252 = vmatpush1.msra.mxu0 %v1176
    %1253 = vmatprep.subr.mxu0 0.0
    %1254 = vmatpush1.msra.mxu0 0.0
    %1255 = vmatprep.subr.mxu0 0.0
    %1256 = vmatpush1.msra.mxu0 0.0
    %1257 = vmatprep.subr.mxu0 0.0
    %1258 = vmatpush1.msra.mxu0 0.0
    %1259 = vmatprep.subr.mxu0 0.0
    %1260 = vmatpush1.msra.mxu0 0.0
    %1261 = vmatprep.subr.mxu0 0.0
    %1262 = vmatpush1.msra.mxu0 0.0
    %1263 = vmatprep.subr.mxu0 0.0
    %1264 = vmatpush1.msra.mxu0 0.0
    %1265 = vmatprep.subr.mxu0 0.0
    %1266 = vmatpush1.msra.mxu0 0.0
    %1267 = vmatprep.subr.mxu0 0.0
    %1268 = vmatpush1.msra.mxu0 0.0
    %1269 = vmatprep.subr.mxu0 0.0
    %1270 = vmatpush1.msra.mxu0 0.0
    %1271 = vmatprep.subr.mxu0 0.0
    %1272 = vmatpush1.msra.mxu0 0.0
    %1273 = vmatprep.subr.mxu0 0.0
    %1274 = vmatpush1.msra.mxu0 0.0
    %1275 = vmatprep.subr.mxu0 0.0
    %1276 = vmatpush1.msra.mxu0 0.0
    %1277 = vmatprep.subr.mxu0 0.0
    %1278 = vmatpush1.msra.mxu0 0.0
    %1279 = vmatprep.subr.mxu0 0.0
    %1280 = vmatpush1.msra.mxu0 0.0
    %1281 = vmatprep.subr.mxu0 0.0
    %1282 = vmatpush1.msra.mxu0 0.0
    %1283 = vmatprep.subr.mxu0 0.0
    %1284 = vmatpush1.msra.mxu0 0.0
    %1285 = vmatprep.subr.mxu0 0.0
    %1286 = vmatpush1.msra.mxu0 0.0
    %1287 = vmatprep.subr.mxu0 0.0
    %1288 = vmatpush1.msra.mxu0 0.0
    %1289 = vmatprep.subr.mxu0 0.0
    %1290 = vmatpush1.msra.mxu0 0.0
    %1291 = vmatprep.subr.mxu0 0.0
    %1292 = vmatpush1.msra.mxu0 0.0
    %1293 = vmatprep.subr.mxu0 0.0
    %1294 = vmatpush1.msra.mxu0 0.0
    %1295 = vmatprep.subr.mxu0 0.0
    %1296 = vmatpush1.msra.mxu0 0.0
    %1297 = vmatprep.subr.mxu0 0.0
    %1298 = vmatpush1.msra.mxu0 0.0
    %1299 = vmatprep.subr.mxu0 0.0
    %1300 = vmatpush1.msra.mxu0 0.0
    %1301 = vmatprep.subr.mxu0 0.0
    %1302 = vmatpush1.msra.mxu0 0.0
    %1303 = vmatprep.subr.mxu0 0.0
    %1304 = vmatpush1.msra.mxu0 0.0
    %1305 = vmatprep.subr.mxu0 0.0
    %1306 = vmatpush1.msra.mxu0 0.0
    %1307 = vmatprep.subr.mxu0 0.0
    %1308 = vmatpush1.msra.mxu0 0.0
    %1309 = vmatprep.subr.mxu0 0.0
    %1310 = vmatpush1.msra.mxu0 0.0
    %1311 = vmatprep.subr.mxu0 0.0
    %1312 = vmatpush1.msra.mxu0 0.0
    %1313 = vmatprep.subr.mxu0 0.0
    %1314 = vmatpush1.msra.mxu0 0.0
    %1315 = vmatprep.mubr.f32.mxu0 0.0
    %1316 = vmatmul.mubr.f32.gmra.mrb[0].mxu0 %v1178
    %v1317 = vpop.f32.mrb[0].mxu0
    %v1318 = vadd.f32 %v78, %v1317
    %v1319 = vpop.f32.mrb[0].mxu0
    %1320 = vdwg.mxu0
    %v1321 = vld [vmem:[#allocation8] sm:$0xff]
    %v1322 = vld [vmem:[#allocation8 + $0x8] sm:$0xff]
    %v1323 = vld [vmem:[#allocation8 + $0x10] sm:$0xff]
    %v1324 = vld [vmem:[#allocation8 + $0x18] sm:$0xff]
    %v1325 = vld [vmem:[#allocation8 + $0x20] sm:$0xff]
    %v1326 = vld [vmem:[#allocation8 + $0x28] sm:$0xff]
    %v1327 = vld [vmem:[#allocation8 + $0x30] sm:$0xff]
    %v1328 = vld [vmem:[#allocation8 + $0x38] sm:$0xff]
    %v1329 = vld [vmem:[#allocation8 + $0x40] sm:$0xff]
    %v1330 = vld [vmem:[#allocation8 + $0x48] sm:$0xff]
    %v1331 = vld [vmem:[#allocation8 + $0x50] sm:$0xff]
    %v1332 = vld [vmem:[#allocation8 + $0x58] sm:$0xff]
    %v1333 = vld [vmem:[#allocation8 + $0x60] sm:$0xff]
    %v1334 = vld [vmem:[#allocation8 + $0x68] sm:$0xff]
    %v1335 = vld [vmem:[#allocation8 + $0x70] sm:$0xff]
    %v1336 = vld [vmem:[#allocation8 + $0x78] sm:$0xff]
    %v1337 = vld [vmem:[#allocation8 + $0x80] sm:$0xff]
    %v1338 = vld [vmem:[#allocation8 + $0x88] sm:$0xff]
    %v1339 = vld [vmem:[#allocation8 + $0x90] sm:$0xff]
    %v1340 = vld [vmem:[#allocation8 + $0x98] sm:$0xff]
    %v1341 = vld [vmem:[#allocation8 + $0xa0] sm:$0xff]
    %v1342 = vld [vmem:[#allocation8 + $0xa8] sm:$0xff]
    %v1343 = vld [vmem:[#allocation8 + $0xb0] sm:$0xff]
    %v1344 = vld [vmem:[#allocation8 + $0xb8] sm:$0xff]
    %v1345 = vld [vmem:[#allocation8 + $0xc0] sm:$0xff]
    %v1346 = vld [vmem:[#allocation8 + $0xc8] sm:$0xff]
    %v1347 = vld [vmem:[#allocation8 + $0xd0] sm:$0xff]
    %v1348 = vld [vmem:[#allocation8 + $0xd8] sm:$0xff]
    %v1349 = vld [vmem:[#allocation8 + $0xe0] sm:$0xff]
    %v1350 = vld [vmem:[#allocation8 + $0xe8] sm:$0xff]
    %v1351 = vld [vmem:[#allocation8 + $0xf0] sm:$0xff]
    %v1352 = vld [vmem:[#allocation8 + $0xf8] sm:$0xff]
    %v1353 = vld [vmem:[#allocation8 + $0x100] sm:$0xff]
    %v1354 = vld [vmem:[#allocation8 + $0x108] sm:$0xff]
    %v1355 = vld [vmem:[#allocation8 + $0x110] sm:$0xff]
    %v1356 = vld [vmem:[#allocation8 + $0x118] sm:$0xff]
    %v1357 = vld [vmem:[#allocation8 + $0x120] sm:$0xff]
    %v1358 = vld [vmem:[#allocation8 + $0x128] sm:$0xff]
    %v1359 = vld [vmem:[#allocation8 + $0x130] sm:$0xff]
    %v1360 = vld [vmem:[#allocation8 + $0x138] sm:$0xff]
    %v1361 = vld [vmem:[#allocation8 + $0x140] sm:$0xff]
    %v1362 = vld [vmem:[#allocation8 + $0x148] sm:$0xff]
    %v1363 = vld [vmem:[#allocation8 + $0x150] sm:$0xff]
    %v1364 = vld [vmem:[#allocation8 + $0x158] sm:$0xff]
    %v1365 = vld [vmem:[#allocation8 + $0x160] sm:$0xff]
    %v1366 = vld [vmem:[#allocation8 + $0x168] sm:$0xff]
    %v1367 = vld [vmem:[#allocation8 + $0x170] sm:$0xff]
    %v1368 = vld [vmem:[#allocation8 + $0x178] sm:$0xff]
    %1369 = vmatprep.subr.mxu0 %v1322
    %1370 = vmatpush1.msra.mxu0 %v1321
    %1371 = vmatprep.subr.mxu0 %v1325
    %1372 = vmatpush1.msra.mxu0 %v1324
    %1373 = vmatprep.subr.mxu0 %v1328
    %1374 = vmatpush1.msra.mxu0 %v1327
    %1375 = vmatprep.subr.mxu0 %v1331
    %1376 = vmatpush1.msra.mxu0 %v1330
    %1377 = vmatprep.subr.mxu0 %v1334
    %1378 = vmatpush1.msra.mxu0 %v1333
    %1379 = vmatprep.subr.mxu0 %v1337
    %1380 = vmatpush1.msra.mxu0 %v1336
    %1381 = vmatprep.subr.mxu0 %v1340
    %1382 = vmatpush1.msra.mxu0 %v1339
    %1383 = vmatprep.subr.mxu0 %v1343
    %1384 = vmatpush1.msra.mxu0 %v1342
    %1385 = vmatprep.subr.mxu0 %v1346
    %1386 = vmatpush1.msra.mxu0 %v1345
    %1387 = vmatprep.subr.mxu0 %v1349
    %1388 = vmatpush1.msra.mxu0 %v1348
    %1389 = vmatprep.subr.mxu0 %v1352
    %1390 = vmatpush1.msra.mxu0 %v1351
    %1391 = vmatprep.subr.mxu0 %v1355
    %1392 = vmatpush1.msra.mxu0 %v1354
    %1393 = vmatprep.subr.mxu0 %v1358
    %1394 = vmatpush1.msra.mxu0 %v1357
    %1395 = vmatprep.subr.mxu0 %v1361
    %1396 = vmatpush1.msra.mxu0 %v1360
    %1397 = vmatprep.subr.mxu0 %v1364
    %1398 = vmatpush1.msra.mxu0 %v1363
    %1399 = vmatprep.subr.mxu0 %v1367
    %1400 = vmatpush1.msra.mxu0 %v1366
    %1401 = vmatprep.subr.mxu0 0.0
    %1402 = vmatpush1.msra.mxu0 0.0
    %1403 = vmatprep.subr.mxu0 0.0
    %1404 = vmatpush1.msra.mxu0 0.0
    %1405 = vmatprep.subr.mxu0 0.0
    %1406 = vmatpush1.msra.mxu0 0.0
    %1407 = vmatprep.subr.mxu0 0.0
    %1408 = vmatpush1.msra.mxu0 0.0
    %1409 = vmatprep.subr.mxu0 0.0
    %1410 = vmatpush1.msra.mxu0 0.0
    %1411 = vmatprep.subr.mxu0 0.0
    %1412 = vmatpush1.msra.mxu0 0.0
    %1413 = vmatprep.subr.mxu0 0.0
    %1414 = vmatpush1.msra.mxu0 0.0
    %1415 = vmatprep.subr.mxu0 0.0
    %1416 = vmatpush1.msra.mxu0 0.0
    %1417 = vmatprep.subr.mxu0 0.0
    %1418 = vmatpush1.msra.mxu0 0.0
    %1419 = vmatprep.subr.mxu0 0.0
    %1420 = vmatpush1.msra.mxu0 0.0
    %1421 = vmatprep.subr.mxu0 0.0
    %1422 = vmatpush1.msra.mxu0 0.0
    %1423 = vmatprep.subr.mxu0 0.0
    %1424 = vmatpush1.msra.mxu0 0.0
    %1425 = vmatprep.subr.mxu0 0.0
    %1426 = vmatpush1.msra.mxu0 0.0
    %1427 = vmatprep.subr.mxu0 0.0
    %1428 = vmatpush1.msra.mxu0 0.0
    %1429 = vmatprep.subr.mxu0 0.0
    %1430 = vmatpush1.msra.mxu0 0.0
    %1431 = vmatprep.subr.mxu0 0.0
    %1432 = vmatpush1.msra.mxu0 0.0
    %1433 = vmatprep.mubr.f32.mxu0 0.0
    %1434 = vmatmul.mubr.f32.gmra.mrb[0].mxu0 %v1169
    %v1435 = vpop.f32.mrb[0].mxu0
    %v1436 = vadd.f32 0.0, %v1435
    %v1437 = vpop.f32.mrb[0].mxu0
    %v1438 = vadd.f32 0.0, %v1437
    %1439 = vdwg.mxu0
    %1440 = vmatprep.subr.mxu0 0.0
    %1441 = vmatpush1.msra.mxu0 %v1323
    %1442 = vmatprep.subr.mxu0 0.0
    %1443 = vmatpush1.msra.mxu0 %v1326
    %1444 = vmatprep.subr.mxu0 0.0
    %1445 = vmatpush1.msra.mxu0 %v1329
    %1446 = vmatprep.subr.mxu0 0.0
    %1447 = vmatpush1.msra.mxu0 %v1332
    %1448 = vmatprep.subr.mxu0 0.0
    %1449 = vmatpush1.msra.mxu0 %v1335
    %1450 = vmatprep.subr.mxu0 0.0
    %1451 = vmatpush1.msra.mxu0 %v1338
    %1452 = vmatprep.subr.mxu0 0.0
    %1453 = vmatpush1.msra.mxu0 %v1341
    %1454 = vmatprep.subr.mxu0 0.0
    %1455 = vmatpush1.msra.mxu0 %v1344
    %1456 = vmatprep.subr.mxu0 0.0
    %1457 = vmatpush1.msra.mxu0 %v1347
    %1458 = vmatprep.subr.mxu0 0.0
    %1459 = vmatpush1.msra.mxu0 %v1350
    %1460 = vmatprep.subr.mxu0 0.0
    %1461 = vmatpush1.msra.mxu0 %v1353
    %1462 = vmatprep.subr.mxu0 0.0
    %1463 = vmatpush1.msra.mxu0 %v1356
    %1464 = vmatprep.subr.mxu0 0.0
    %1465 = vmatpush1.msra.mxu0 %v1359
    %1466 = vmatprep.subr.mxu0 0.0
    %1467 = vmatpush1.msra.mxu0 %v1362
    %1468 = vmatprep.subr.mxu0 0.0
    %1469 = vmatpush1.msra.mxu0 %v1365
    %1470 = vmatprep.subr.mxu0 0.0
    %1471 = vmatpush1.msra.mxu0 %v1368
    %1472 = vmatprep.subr.mxu0 0.0
    %1473 = vmatpush1.msra.mxu0 0.0
    %1474 = vmatprep.subr.mxu0 0.0
    %1475 = vmatpush1.msra.mxu0 0.0
    %1476 = vmatprep.subr.mxu0 0.0
    %1477 = vmatpush1.msra.mxu0 0.0
    %1478 = vmatprep.subr.mxu0 0.0
    %1479 = vmatpush1.msra.mxu0 0.0
    %1480 = vmatprep.subr.mxu0 0.0
    %1481 = vmatpush1.msra.mxu0 0.0
    %1482 = vmatprep.subr.mxu0 0.0
    %1483 = vmatpush1.msra.mxu0 0.0
    %1484 = vmatprep.subr.mxu0 0.0
    %1485 = vmatpush1.msra.mxu0 0.0
    %1486 = vmatprep.subr.mxu0 0.0
    %1487 = vmatpush1.msra.mxu0 0.0
    %1488 = vmatprep.subr.mxu0 0.0
    %1489 = vmatpush1.msra.mxu0 0.0
    %1490 = vmatprep.subr.mxu0 0.0
    %1491 = vmatpush1.msra.mxu0 0.0
    %1492 = vmatprep.subr.mxu0 0.0
    %1493 = vmatpush1.msra.mxu0 0.0
    %1494 = vmatprep.subr.mxu0 0.0
    %1495 = vmatpush1.msra.mxu0 0.0
    %1496 = vmatprep.subr.mxu0 0.0
    %1497 = vmatpush1.msra.mxu0 0.0
    %1498 = vmatprep.subr.mxu0 0.0
    %1499 = vmatpush1.msra.mxu0 0.0
    %1500 = vmatprep.subr.mxu0 0.0
    %1501 = vmatpush1.msra.mxu0 0.0
    %1502 = vmatprep.subr.mxu0 0.0
    %1503 = vmatpush1.msra.mxu0 0.0
    %1504 = vmatprep.mubr.f32.mxu0 0.0
    %1505 = vmatmul.mubr.f32.gmra.mrb[0].mxu0 %v1169
    %v1506 = vpop.f32.mrb[0].mxu0
    %v1507 = vadd.f32 0.0, %v1506
    %v1508 = vpop.f32.mrb[0].mxu0
    %1509 = vdwg.mxu0
    %v1510 = vadd.f32 %v1247, %v1436
    %v1511 = vxor.u32 %v1510, 2147483648
    %v1512 = vmul.f32 %v1511, 1.442695
    %v1513 = vpow.pop %v1512
    %v1514 = vadd.f32 %v1513, 1.0
    %v1515 = vrcp.pop %v1514
    %v1516 = vmul.f32 1.0, %v1515
    %v1517 = vadd.f32 %v1249, %v1438
    %v1518 = vxor.u32 %v1517, 2147483648
    %v1519 = vmul.f32 %v1518, 1.442695
    %v1520 = vpow.pop %v1519
    %v1521 = vadd.f32 %v1520, 1.0
    %v1522 = vrcp.pop %v1521
    %v1523 = vmul.f32 1.0, %v1522
    %v1524 = vadd.f32 %v1507, %v87
    %v1525 = vmul.f32 %v1516, %v1524
    %v1526 = vadd.f32 %v1318, %v1525
    %v1527 = vtanh.pop %v1526
    %v1528 = vsub.f32 %v1169, %v1527
    %v1529 = vmul.f32 %v1523, %v1528
    %v1530 = vadd.f32 %v1527, %v1529
    %s1531 = scalar_lea.vmem [#allocation9], 12
    %1532 = vst [vmem:[%s1531] sm:$0xf] %v1530
    %s1533 = scalar_lea.vmem [#allocation3], 16
    %v1534 = vld [vmem:[%s1533] sm:$0xf]
    %v1535 = vld [vmem:[#allocation6] sm:$0xff]
    %v1536 = vld [vmem:[#allocation6 + $0x8] sm:$0xff]
    %v1537 = vld [vmem:[#allocation6 + $0x10] sm:$0xff]
    %v1539 = vsel %vm94, %v1534, 0
    %1541 = vmatprep.subr.mxu0 %v1536
    %1542 = vmatpush1.msra.mxu0 %v1535
    %1543 = vmatprep.subr.mxu0 0.0
    %1544 = vmatpush1.msra.mxu0 0.0
    %1545 = vmatprep.subr.mxu0 0.0
    %1546 = vmatpush1.msra.mxu0 0.0
    %1547 = vmatprep.subr.mxu0 0.0
    %1548 = vmatpush1.msra.mxu0 0.0
    %1549 = vmatprep.subr.mxu0 0.0
    %1550 = vmatpush1.msra.mxu0 0.0
    %1551 = vmatprep.subr.mxu0 0.0
    %1552 = vmatpush1.msra.mxu0 0.0
    %1553 = vmatprep.subr.mxu0 0.0
    %1554 = vmatpush1.msra.mxu0 0.0
    %1555 = vmatprep.subr.mxu0 0.0
    %1556 = vmatpush1.msra.mxu0 0.0
    %1557 = vmatprep.subr.mxu0 0.0
    %1558 = vmatpush1.msra.mxu0 0.0
    %1559 = vmatprep.subr.mxu0 0.0
    %1560 = vmatpush1.msra.mxu0 0.0
    %1561 = vmatprep.subr.mxu0 0.0
    %1562 = vmatpush1.msra.mxu0 0.0
    %1563 = vmatprep.subr.mxu0 0.0
    %1564 = vmatpush1.msra.mxu0 0.0
    %1565 = vmatprep.subr.mxu0 0.0
    %1566 = vmatpush1.msra.mxu0 0.0
    %1567 = vmatprep.subr.mxu0 0.0
    %1568 = vmatpush1.msra.mxu0 0.0
    %1569 = vmatprep.subr.mxu0 0.0
    %1570 = vmatpush1.msra.mxu0 0.0
    %1571 = vmatprep.subr.mxu0 0.0
    %1572 = vmatpush1.msra.mxu0 0.0
    %1573 = vmatprep.subr.mxu0 0.0
    %1574 = vmatpush1.msra.mxu0 0.0
    %1575 = vmatprep.subr.mxu0 0.0
    %1576 = vmatpush1.msra.mxu0 0.0
    %1577 = vmatprep.subr.mxu0 0.0
    %1578 = vmatpush1.msra.mxu0 0.0
    %1579 = vmatprep.subr.mxu0 0.0
    %1580 = vmatpush1.msra.mxu0 0.0
    %1581 = vmatprep.subr.mxu0 0.0
    %1582 = vmatpush1.msra.mxu0 0.0
    %1583 = vmatprep.subr.mxu0 0.0
    %1584 = vmatpush1.msra.mxu0 0.0
    %1585 = vmatprep.subr.mxu0 0.0
    %1586 = vmatpush1.msra.mxu0 0.0
    %1587 = vmatprep.subr.mxu0 0.0
    %1588 = vmatpush1.msra.mxu0 0.0
    %1589 = vmatprep.subr.mxu0 0.0
    %1590 = vmatpush1.msra.mxu0 0.0
    %1591 = vmatprep.subr.mxu0 0.0
    %1592 = vmatpush1.msra.mxu0 0.0
    %1593 = vmatprep.subr.mxu0 0.0
    %1594 = vmatpush1.msra.mxu0 0.0
    %1595 = vmatprep.subr.mxu0 0.0
    %1596 = vmatpush1.msra.mxu0 0.0
    %1597 = vmatprep.subr.mxu0 0.0
    %1598 = vmatpush1.msra.mxu0 0.0
    %1599 = vmatprep.subr.mxu0 0.0
    %1600 = vmatpush1.msra.mxu0 0.0
    %1601 = vmatprep.subr.mxu0 0.0
    %1602 = vmatpush1.msra.mxu0 0.0
    %1603 = vmatprep.subr.mxu0 0.0
    %1604 = vmatpush1.msra.mxu0 0.0
    %1605 = vmatprep.mubr.f32.mxu0 0.0
    %1606 = vmatmul.mubr.f32.gmra.mrb[0].mxu0 %v1539
    %v1607 = vpop.f32.mrb[0].mxu0
    %v1608 = vadd.f32 %v70, %v1607
    %v1609 = vpop.f32.mrb[0].mxu0
    %v1610 = vadd.f32 %v74, %v1609
    %1611 = vdwg.mxu0
    %1612 = vmatprep.subr.mxu0 0.0
    %1613 = vmatpush1.msra.mxu0 %v1537
    %1614 = vmatprep.subr.mxu0 0.0
    %1615 = vmatpush1.msra.mxu0 0.0
    %1616 = vmatprep.subr.mxu0 0.0
    %1617 = vmatpush1.msra.mxu0 0.0
    %1618 = vmatprep.subr.mxu0 0.0
    %1619 = vmatpush1.msra.mxu0 0.0
    %1620 = vmatprep.subr.mxu0 0.0
    %1621 = vmatpush1.msra.mxu0 0.0
    %1622 = vmatprep.subr.mxu0 0.0
    %1623 = vmatpush1.msra.mxu0 0.0
    %1624 = vmatprep.subr.mxu0 0.0
    %1625 = vmatpush1.msra.mxu0 0.0
    %1626 = vmatprep.subr.mxu0 0.0
    %1627 = vmatpush1.msra.mxu0 0.0
    %1628 = vmatprep.subr.mxu0 0.0
    %1629 = vmatpush1.msra.mxu0 0.0
    %1630 = vmatprep.subr.mxu0 0.0
    %1631 = vmatpush1.msra.mxu0 0.0
    %1632 = vmatprep.subr.mxu0 0.0
    %1633 = vmatpush1.msra.mxu0 0.0
    %1634 = vmatprep.subr.mxu0 0.0
    %1635 = vmatpush1.msra.mxu0 0.0
    %1636 = vmatprep.subr.mxu0 0.0
    %1637 = vmatpush1.msra.mxu0 0.0
    %1638 = vmatprep.subr.mxu0 0.0
    %1639 = vmatpush1.msra.mxu0 0.0
    %1640 = vmatprep.subr.mxu0 0.0
    %1641 = vmatpush1.msra.mxu0 0.0
    %1642 = vmatprep.subr.mxu0 0.0
    %1643 = vmatpush1.msra.mxu0 0.0
    %1644 = vmatprep.subr.mxu0 0.0
    %1645 = vmatpush1.msra.mxu0 0.0
    %1646 = vmatprep.subr.mxu0 0.0
    %1647 = vmatpush1.msra.mxu0 0.0
    %1648 = vmatprep.subr.mxu0 0.0
    %1649 = vmatpush1.msra.mxu0 0.0
    %1650 = vmatprep.subr.mxu0 0.0
    %1651 = vmatpush1.msra.mxu0 0.0
    %1652 = vmatprep.subr.mxu0 0.0
    %1653 = vmatpush1.msra.mxu0 0.0
    %1654 = vmatprep.subr.mxu0 0.0
    %1655 = vmatpush1.msra.mxu0 0.0
    %1656 = vmatprep.subr.mxu0 0.0
    %1657 = vmatpush1.msra.mxu0 0.0
    %1658 = vmatprep.subr.mxu0 0.0
    %1659 = vmatpush1.msra.mxu0 0.0
    %1660 = vmatprep.subr.mxu0 0.0
    %1661 = vmatpush1.msra.mxu0 0.0
    %1662 = vmatprep.subr.mxu0 0.0
    %1663 = vmatpush1.msra.mxu0 0.0
    %1664 = vmatprep.subr.mxu0 0.0
    %1665 = vmatpush1.msra.mxu0 0.0
    %1666 = vmatprep.subr.mxu0 0.0
    %1667 = vmatpush1.msra.mxu0 0.0
    %1668 = vmatprep.subr.mxu0 0.0
    %1669 = vmatpush1.msra.mxu0 0.0
    %1670 = vmatprep.subr.mxu0 0.0
    %1671 = vmatpush1.msra.mxu0 0.0
    %1672 = vmatprep.subr.mxu0 0.0
    %1673 = vmatpush1.msra.mxu0 0.0
    %1674 = vmatprep.subr.mxu0 0.0
    %1675 = vmatpush1.msra.mxu0 0.0
    %1676 = vmatprep.mubr.f32.mxu0 0.0
    %1677 = vmatmul.mubr.f32.gmra.mrb[0].mxu0 %v1539
    %v1678 = vpop.f32.mrb[0].mxu0
    %v1679 = vadd.f32 %v78, %v1678
    %v1680 = vpop.f32.mrb[0].mxu0
    %1681 = vdwg.mxu0
    %v1682 = vld [vmem:[#allocation8] sm:$0xff]
    %v1683 = vld [vmem:[#allocation8 + $0x8] sm:$0xff]
    %v1684 = vld [vmem:[#allocation8 + $0x10] sm:$0xff]
    %v1685 = vld [vmem:[#allocation8 + $0x18] sm:$0xff]
    %v1686 = vld [vmem:[#allocation8 + $0x20] sm:$0xff]
    %v1687 = vld [vmem:[#allocation8 + $0x28] sm:$0xff]
    %v1688 = vld [vmem:[#allocation8 + $0x30] sm:$0xff]
    %v1689 = vld [vmem:[#allocation8 + $0x38] sm:$0xff]
    %v1690 = vld [vmem:[#allocation8 + $0x40] sm:$0xff]
    %v1691 = vld [vmem:[#allocation8 + $0x48] sm:$0xff]
    %v1692 = vld [vmem:[#allocation8 + $0x50] sm:$0xff]
    %v1693 = vld [vmem:[#allocation8 + $0x58] sm:$0xff]
    %v1694 = vld [vmem:[#allocation8 + $0x60] sm:$0xff]
    %v1695 = vld [vmem:[#allocation8 + $0x68] sm:$0xff]
    %v1696 = vld [vmem:[#allocation8 + $0x70] sm:$0xff]
    %v1697 = vld [vmem:[#allocation8 + $0x78] sm:$0xff]
    %v1698 = vld [vmem:[#allocation8 + $0x80] sm:$0xff]
    %v1699 = vld [vmem:[#allocation8 + $0x88] sm:$0xff]
    %v1700 = vld [vmem:[#allocation8 + $0x90] sm:$0xff]
    %v1701 = vld [vmem:[#allocation8 + $0x98] sm:$0xff]
    %v1702 = vld [vmem:[#allocation8 + $0xa0] sm:$0xff]
    %v1703 = vld [vmem:[#allocation8 + $0xa8] sm:$0xff]
    %v1704 = vld [vmem:[#allocation8 + $0xb0] sm:$0xff]
    %v1705 = vld [vmem:[#allocation8 + $0xb8] sm:$0xff]
    %v1706 = vld [vmem:[#allocation8 + $0xc0] sm:$0xff]
    %v1707 = vld [vmem:[#allocation8 + $0xc8] sm:$0xff]
    %v1708 = vld [vmem:[#allocation8 + $0xd0] sm:$0xff]
    %v1709 = vld [vmem:[#allocation8 + $0xd8] sm:$0xff]
    %v1710 = vld [vmem:[#allocation8 + $0xe0] sm:$0xff]
    %v1711 = vld [vmem:[#allocation8 + $0xe8] sm:$0xff]
    %v1712 = vld [vmem:[#allocation8 + $0xf0] sm:$0xff]
    %v1713 = vld [vmem:[#allocation8 + $0xf8] sm:$0xff]
    %v1714 = vld [vmem:[#allocation8 + $0x100] sm:$0xff]
    %v1715 = vld [vmem:[#allocation8 + $0x108] sm:$0xff]
    %v1716 = vld [vmem:[#allocation8 + $0x110] sm:$0xff]
    %v1717 = vld [vmem:[#allocation8 + $0x118] sm:$0xff]
    %v1718 = vld [vmem:[#allocation8 + $0x120] sm:$0xff]
    %v1719 = vld [vmem:[#allocation8 + $0x128] sm:$0xff]
    %v1720 = vld [vmem:[#allocation8 + $0x130] sm:$0xff]
    %v1721 = vld [vmem:[#allocation8 + $0x138] sm:$0xff]
    %v1722 = vld [vmem:[#allocation8 + $0x140] sm:$0xff]
    %v1723 = vld [vmem:[#allocation8 + $0x148] sm:$0xff]
    %v1724 = vld [vmem:[#allocation8 + $0x150] sm:$0xff]
    %v1725 = vld [vmem:[#allocation8 + $0x158] sm:$0xff]
    %v1726 = vld [vmem:[#allocation8 + $0x160] sm:$0xff]
    %v1727 = vld [vmem:[#allocation8 + $0x168] sm:$0xff]
    %v1728 = vld [vmem:[#allocation8 + $0x170] sm:$0xff]
    %v1729 = vld [vmem:[#allocation8 + $0x178] sm:$0xff]
    %1730 = vmatprep.subr.mxu0 %v1683
    %1731 = vmatpush1.msra.mxu0 %v1682
    %1732 = vmatprep.subr.mxu0 %v1686
    %1733 = vmatpush1.msra.mxu0 %v1685
    %1734 = vmatprep.subr.mxu0 %v1689
    %1735 = vmatpush1.msra.mxu0 %v1688
    %1736 = vmatprep.subr.mxu0 %v1692
    %1737 = vmatpush1.msra.mxu0 %v1691
    %1738 = vmatprep.subr.mxu0 %v1695
    %1739 = vmatpush1.msra.mxu0 %v1694
    %1740 = vmatprep.subr.mxu0 %v1698
    %1741 = vmatpush1.msra.mxu0 %v1697
    %1742 = vmatprep.subr.mxu0 %v1701
    %1743 = vmatpush1.msra.mxu0 %v1700
    %1744 = vmatprep.subr.mxu0 %v1704
    %1745 = vmatpush1.msra.mxu0 %v1703
    %1746 = vmatprep.subr.mxu0 %v1707
    %1747 = vmatpush1.msra.mxu0 %v1706
    %1748 = vmatprep.subr.mxu0 %v1710
    %1749 = vmatpush1.msra.mxu0 %v1709
    %1750 = vmatprep.subr.mxu0 %v1713
    %1751 = vmatpush1.msra.mxu0 %v1712
    %1752 = vmatprep.subr.mxu0 %v1716
    %1753 = vmatpush1.msra.mxu0 %v1715
    %1754 = vmatprep.subr.mxu0 %v1719
    %1755 = vmatpush1.msra.mxu0 %v1718
    %1756 = vmatprep.subr.mxu0 %v1722
    %1757 = vmatpush1.msra.mxu0 %v1721
    %1758 = vmatprep.subr.mxu0 %v1725
    %1759 = vmatpush1.msra.mxu0 %v1724
    %1760 = vmatprep.subr.mxu0 %v1728
    %1761 = vmatpush1.msra.mxu0 %v1727
    %1762 = vmatprep.subr.mxu0 0.0
    %1763 = vmatpush1.msra.mxu0 0.0
    %1764 = vmatprep.subr.mxu0 0.0
    %1765 = vmatpush1.msra.mxu0 0.0
    %1766 = vmatprep.subr.mxu0 0.0
    %1767 = vmatpush1.msra.mxu0 0.0
    %1768 = vmatprep.subr.mxu0 0.0
    %1769 = vmatpush1.msra.mxu0 0.0
    %1770 = vmatprep.subr.mxu0 0.0
    %1771 = vmatpush1.msra.mxu0 0.0
    %1772 = vmatprep.subr.mxu0 0.0
    %1773 = vmatpush1.msra.mxu0 0.0
    %1774 = vmatprep.subr.mxu0 0.0
    %1775 = vmatpush1.msra.mxu0 0.0
    %1776 = vmatprep.subr.mxu0 0.0
    %1777 = vmatpush1.msra.mxu0 0.0
    %1778 = vmatprep.subr.mxu0 0.0
    %1779 = vmatpush1.msra.mxu0 0.0
    %1780 = vmatprep.subr.mxu0 0.0
    %1781 = vmatpush1.msra.mxu0 0.0
    %1782 = vmatprep.subr.mxu0 0.0
    %1783 = vmatpush1.msra.mxu0 0.0
    %1784 = vmatprep.subr.mxu0 0.0
    %1785 = vmatpush1.msra.mxu0 0.0
    %1786 = vmatprep.subr.mxu0 0.0
    %1787 = vmatpush1.msra.mxu0 0.0
    %1788 = vmatprep.subr.mxu0 0.0
    %1789 = vmatpush1.msra.mxu0 0.0
    %1790 = vmatprep.subr.mxu0 0.0
    %1791 = vmatpush1.msra.mxu0 0.0
    %1792 = vmatprep.subr.mxu0 0.0
    %1793 = vmatpush1.msra.mxu0 0.0
    %1794 = vmatprep.mubr.f32.mxu0 0.0
    %1795 = vmatmul.mubr.f32.gmra.mrb[0].mxu0 %v1530
    %v1796 = vpop.f32.mrb[0].mxu0
    %v1797 = vadd.f32 0.0, %v1796
    %v1798 = vpop.f32.mrb[0].mxu0
    %v1799 = vadd.f32 0.0, %v1798
    %1800 = vdwg.mxu0
    %1801 = vmatprep.subr.mxu0 0.0
    %1802 = vmatpush1.msra.mxu0 %v1684
    %1803 = vmatprep.subr.mxu0 0.0
    %1804 = vmatpush1.msra.mxu0 %v1687
    %1805 = vmatprep.subr.mxu0 0.0
    %1806 = vmatpush1.msra.mxu0 %v1690
    %1807 = vmatprep.subr.mxu0 0.0
    %1808 = vmatpush1.msra.mxu0 %v1693
    %1809 = vmatprep.subr.mxu0 0.0
    %1810 = vmatpush1.msra.mxu0 %v1696
    %1811 = vmatprep.subr.mxu0 0.0
    %1812 = vmatpush1.msra.mxu0 %v1699
    %1813 = vmatprep.subr.mxu0 0.0
    %1814 = vmatpush1.msra.mxu0 %v1702
    %1815 = vmatprep.subr.mxu0 0.0
    %1816 = vmatpush1.msra.mxu0 %v1705
    %1817 = vmatprep.subr.mxu0 0.0
    %1818 = vmatpush1.msra.mxu0 %v1708
    %1819 = vmatprep.subr.mxu0 0.0
    %1820 = vmatpush1.msra.mxu0 %v1711
    %1821 = vmatprep.subr.mxu0 0.0
    %1822 = vmatpush1.msra.mxu0 %v1714
    %1823 = vmatprep.subr.mxu0 0.0
    %1824 = vmatpush1.msra.mxu0 %v1717
    %1825 = vmatprep.subr.mxu0 0.0
    %1826 = vmatpush1.msra.mxu0 %v1720
    %1827 = vmatprep.subr.mxu0 0.0
    %1828 = vmatpush1.msra.mxu0 %v1723
    %1829 = vmatprep.subr.mxu0 0.0
    %1830 = vmatpush1.msra.mxu0 %v1726
    %1831 = vmatprep.subr.mxu0 0.0
    %1832 = vmatpush1.msra.mxu0 %v1729
    %1833 = vmatprep.subr.mxu0 0.0
    %1834 = vmatpush1.msra.mxu0 0.0
    %1835 = vmatprep.subr.mxu0 0.0
    %1836 = vmatpush1.msra.mxu0 0.0
    %1837 = vmatprep.subr.mxu0 0.0
    %1838 = vmatpush1.msra.mxu0 0.0
    %1839 = vmatprep.subr.mxu0 0.0
    %1840 = vmatpush1.msra.mxu0 0.0
    %1841 = vmatprep.subr.mxu0 0.0
    %1842 = vmatpush1.msra.mxu0 0.0
    %1843 = vmatprep.subr.mxu0 0.0
    %1844 = vmatpush1.msra.mxu0 0.0
    %1845 = vmatprep.subr.mxu0 0.0
    %1846 = vmatpush1.msra.mxu0 0.0
    %1847 = vmatprep.subr.mxu0 0.0
    %1848 = vmatpush1.msra.mxu0 0.0
    %1849 = vmatprep.subr.mxu0 0.0
    %1850 = vmatpush1.msra.mxu0 0.0
    %1851 = vmatprep.subr.mxu0 0.0
    %1852 = vmatpush1.msra.mxu0 0.0
    %1853 = vmatprep.subr.mxu0 0.0
    %1854 = vmatpush1.msra.mxu0 0.0
    %1855 = vmatprep.subr.mxu0 0.0
    %1856 = vmatpush1.msra.mxu0 0.0
    %1857 = vmatprep.subr.mxu0 0.0
    %1858 = vmatpush1.msra.mxu0 0.0
    %1859 = vmatprep.subr.mxu0 0.0
    %1860 = vmatpush1.msra.mxu0 0.0
    %1861 = vmatprep.subr.mxu0 0.0
    %1862 = vmatpush1.msra.mxu0 0.0
    %1863 = vmatprep.subr.mxu0 0.0
    %1864 = vmatpush1.msra.mxu0 0.0
    %1865 = vmatprep.mubr.f32.mxu0 0.0
    %1866 = vmatmul.mubr.f32.gmra.mrb[0].mxu0 %v1530
    %v1867 = vpop.f32.mrb[0].mxu0
    %v1868 = vadd.f32 0.0, %v1867
    %v1869 = vpop.f32.mrb[0].mxu0
    %1870 = vdwg.mxu0
    %v1871 = vadd.f32 %v1608, %v1797
    %v1872 = vxor.u32 %v1871, 2147483648
    %v1873 = vmul.f32 %v1872, 1.442695
    %v1874 = vpow.pop %v1873
    %v1875 = vadd.f32 %v1874, 1.0
    %v1876 = vrcp.pop %v1875
    %v1877 = vmul.f32 1.0, %v1876
    %v1878 = vadd.f32 %v1610, %v1799
    %v1879 = vxor.u32 %v1878, 2147483648
    %v1880 = vmul.f32 %v1879, 1.442695
    %v1881 = vpow.pop %v1880
    %v1882 = vadd.f32 %v1881, 1.0
    %v1883 = vrcp.pop %v1882
    %v1884 = vmul.f32 1.0, %v1883
    %v1885 = vadd.f32 %v1868, %v87
    %v1886 = vmul.f32 %v1877, %v1885
    %v1887 = vadd.f32 %v1679, %v1886
    %v1888 = vtanh.pop %v1887
    %v1889 = vsub.f32 %v1530, %v1888
    %v1890 = vmul.f32 %v1884, %v1889
    %v1891 = vadd.f32 %v1888, %v1890
    %s1892 = scalar_lea.vmem [#allocation9], 16
    %1893 = vst [vmem:[%s1892] sm:$0xf] %v1891
    %s1894 = scalar_lea.vmem [#allocation3], 20
    %v1895 = vld [vmem:[%s1894] sm:$0xf]
    %v1896 = vld [vmem:[#allocation6] sm:$0xff]
    %v1897 = vld [vmem:[#allocation6 + $0x8] sm:$0xff]
    %v1898 = vld [vmem:[#allocation6 + $0x10] sm:$0xff]
    %v1900 = vsel %vm94, %v1895, 0
    %1902 = vmatprep.subr.mxu0 %v1897
    %1903 = vmatpush1.msra.mxu0 %v1896
    %1904 = vmatprep.subr.mxu0 0.0
    %1905 = vmatpush1.msra.mxu0 0.0
    %1906 = vmatprep.subr.mxu0 0.0
    %1907 = vmatpush1.msra.mxu0 0.0
    %1908 = vmatprep.subr.mxu0 0.0
    %1909 = vmatpush1.msra.mxu0 0.0
    %1910 = vmatprep.subr.mxu0 0.0
    %1911 = vmatpush1.msra.mxu0 0.0
    %1912 = vmatprep.subr.mxu0 0.0
    %1913 = vmatpush1.msra.mxu0 0.0
    %1914 = vmatprep.subr.mxu0 0.0
    %1915 = vmatpush1.msra.mxu0 0.0
    %1916 = vmatprep.subr.mxu0 0.0
    %1917 = vmatpush1.msra.mxu0 0.0
    %1918 = vmatprep.subr.mxu0 0.0
    %1919 = vmatpush1.msra.mxu0 0.0
    %1920 = vmatprep.subr.mxu0 0.0
    %1921 = vmatpush1.msra.mxu0 0.0
    %1922 = vmatprep.subr.mxu0 0.0
    %1923 = vmatpush1.msra.mxu0 0.0
    %1924 = vmatprep.subr.mxu0 0.0
    %1925 = vmatpush1.msra.mxu0 0.0
    %1926 = vmatprep.subr.mxu0 0.0
    %1927 = vmatpush1.msra.mxu0 0.0
    %1928 = vmatprep.subr.mxu0 0.0
    %1929 = vmatpush1.msra.mxu0 0.0
    %1930 = vmatprep.subr.mxu0 0.0
    %1931 = vmatpush1.msra.mxu0 0.0
    %1932 = vmatprep.subr.mxu0 0.0
    %1933 = vmatpush1.msra.mxu0 0.0
    %1934 = vmatprep.subr.mxu0 0.0
    %1935 = vmatpush1.msra.mxu0 0.0
    %1936 = vmatprep.subr.mxu0 0.0
    %1937 = vmatpush1.msra.mxu0 0.0
    %1938 = vmatprep.subr.mxu0 0.0
    %1939 = vmatpush1.msra.mxu0 0.0
    %1940 = vmatprep.subr.mxu0 0.0
    %1941 = vmatpush1.msra.mxu0 0.0
    %1942 = vmatprep.subr.mxu0 0.0
    %1943 = vmatpush1.msra.mxu0 0.0
    %1944 = vmatprep.subr.mxu0 0.0
    %1945 = vmatpush1.msra.mxu0 0.0
    %1946 = vmatprep.subr.mxu0 0.0
    %1947 = vmatpush1.msra.mxu0 0.0
    %1948 = vmatprep.subr.mxu0 0.0
    %1949 = vmatpush1.msra.mxu0 0.0
    %1950 = vmatprep.subr.mxu0 0.0
    %1951 = vmatpush1.msra.mxu0 0.0
    %1952 = vmatprep.subr.mxu0 0.0
    %1953 = vmatpush1.msra.mxu0 0.0
    %1954 = vmatprep.subr.mxu0 0.0
    %1955 = vmatpush1.msra.mxu0 0.0
    %1956 = vmatprep.subr.mxu0 0.0
    %1957 = vmatpush1.msra.mxu0 0.0
    %1958 = vmatprep.subr.mxu0 0.0
    %1959 = vmatpush1.msra.mxu0 0.0
    %1960 = vmatprep.subr.mxu0 0.0
    %1961 = vmatpush1.msra.mxu0 0.0
    %1962 = vmatprep.subr.mxu0 0.0
    %1963 = vmatpush1.msra.mxu0 0.0
    %1964 = vmatprep.subr.mxu0 0.0
    %1965 = vmatpush1.msra.mxu0 0.0
    %1966 = vmatprep.mubr.f32.mxu0 0.0
    %1967 = vmatmul.mubr.f32.gmra.mrb[0].mxu0 %v1900
    %v1968 = vpop.f32.mrb[0].mxu0
    %v1969 = vadd.f32 %v70, %v1968
    %v1970 = vpop.f32.mrb[0].mxu0
    %v1971 = vadd.f32 %v74, %v1970
    %1972 = vdwg.mxu0
    %1973 = vmatprep.subr.mxu0 0.0
    %1974 = vmatpush1.msra.mxu0 %v1898
    %1975 = vmatprep.subr.mxu0 0.0
    %1976 = vmatpush1.msra.mxu0 0.0
    %1977 = vmatprep.subr.mxu0 0.0
    %1978 = vmatpush1.msra.mxu0 0.0
    %1979 = vmatprep.subr.mxu0 0.0
    %1980 = vmatpush1.msra.mxu0 0.0
    %1981 = vmatprep.subr.mxu0 0.0
    %1982 = vmatpush1.msra.mxu0 0.0
    %1983 = vmatprep.subr.mxu0 0.0
    %1984 = vmatpush1.msra.mxu0 0.0
    %1985 = vmatprep.subr.mxu0 0.0
    %1986 = vmatpush1.msra.mxu0 0.0
    %1987 = vmatprep.subr.mxu0 0.0
    %1988 = vmatpush1.msra.mxu0 0.0
    %1989 = vmatprep.subr.mxu0 0.0
    %1990 = vmatpush1.msra.mxu0 0.0
    %1991 = vmatprep.subr.mxu0 0.0
    %1992 = vmatpush1.msra.mxu0 0.0
    %1993 = vmatprep.subr.mxu0 0.0
    %1994 = vmatpush1.msra.mxu0 0.0
    %1995 = vmatprep.subr.mxu0 0.0
    %1996 = vmatpush1.msra.mxu0 0.0
    %1997 = vmatprep.subr.mxu0 0.0
    %1998 = vmatpush1.msra.mxu0 0.0
    %1999 = vmatprep.subr.mxu0 0.0
    %2000 = vmatpush1.msra.mxu0 0.0
    %2001 = vmatprep.subr.mxu0 0.0
    %2002 = vmatpush1.msra.mxu0 0.0
    %2003 = vmatprep.subr.mxu0 0.0
    %2004 = vmatpush1.msra.mxu0 0.0
    %2005 = vmatprep.subr.mxu0 0.0
    %2006 = vmatpush1.msra.mxu0 0.0
    %2007 = vmatprep.subr.mxu0 0.0
    %2008 = vmatpush1.msra.mxu0 0.0
    %2009 = vmatprep.subr.mxu0 0.0
    %2010 = vmatpush1.msra.mxu0 0.0
    %2011 = vmatprep.subr.mxu0 0.0
    %2012 = vmatpush1.msra.mxu0 0.0
    %2013 = vmatprep.subr.mxu0 0.0
    %2014 = vmatpush1.msra.mxu0 0.0
    %2015 = vmatprep.subr.mxu0 0.0
    %2016 = vmatpush1.msra.mxu0 0.0
    %2017 = vmatprep.subr.mxu0 0.0
    %2018 = vmatpush1.msra.mxu0 0.0
    %2019 = vmatprep.subr.mxu0 0.0
    %2020 = vmatpush1.msra.mxu0 0.0
    %2021 = vmatprep.subr.mxu0 0.0
    %2022 = vmatpush1.msra.mxu0 0.0
    %2023 = vmatprep.subr.mxu0 0.0
    %2024 = vmatpush1.msra.mxu0 0.0
    %2025 = vmatprep.subr.mxu0 0.0
    %2026 = vmatpush1.msra.mxu0 0.0
    %2027 = vmatprep.subr.mxu0 0.0
    %2028 = vmatpush1.msra.mxu0 0.0
    %2029 = vmatprep.subr.mxu0 0.0
    %2030 = vmatpush1.msra.mxu0 0.0
    %2031 = vmatprep.subr.mxu0 0.0
    %2032 = vmatpush1.msra.mxu0 0.0
    %2033 = vmatprep.subr.mxu0 0.0
    %2034 = vmatpush1.msra.mxu0 0.0
    %2035 = vmatprep.subr.mxu0 0.0
    %2036 = vmatpush1.msra.mxu0 0.0
    %2037 = vmatprep.mubr.f32.mxu0 0.0
    %2038 = vmatmul.mubr.f32.gmra.mrb[0].mxu0 %v1900
    %v2039 = vpop.f32.mrb[0].mxu0
    %v2040 = vadd.f32 %v78, %v2039
    %v2041 = vpop.f32.mrb[0].mxu0
    %2042 = vdwg.mxu0
    %v2043 = vld [vmem:[#allocation8] sm:$0xff]
    %v2044 = vld [vmem:[#allocation8 + $0x8] sm:$0xff]
    %v2045 = vld [vmem:[#allocation8 + $0x10] sm:$0xff]
    %v2046 = vld [vmem:[#allocation8 + $0x18] sm:$0xff]
    %v2047 = vld [vmem:[#allocation8 + $0x20] sm:$0xff]
    %v2048 = vld [vmem:[#allocation8 + $0x28] sm:$0xff]
    %v2049 = vld [vmem:[#allocation8 + $0x30] sm:$0xff]
    %v2050 = vld [vmem:[#allocation8 + $0x38] sm:$0xff]
    %v2051 = vld [vmem:[#allocation8 + $0x40] sm:$0xff]
    %v2052 = vld [vmem:[#allocation8 + $0x48] sm:$0xff]
    %v2053 = vld [vmem:[#allocation8 + $0x50] sm:$0xff]
    %v2054 = vld [vmem:[#allocation8 + $0x58] sm:$0xff]
    %v2055 = vld [vmem:[#allocation8 + $0x60] sm:$0xff]
    %v2056 = vld [vmem:[#allocation8 + $0x68] sm:$0xff]
    %v2057 = vld [vmem:[#allocation8 + $0x70] sm:$0xff]
    %v2058 = vld [vmem:[#allocation8 + $0x78] sm:$0xff]
    %v2059 = vld [vmem:[#allocation8 + $0x80] sm:$0xff]
    %v2060 = vld [vmem:[#allocation8 + $0x88] sm:$0xff]
    %v2061 = vld [vmem:[#allocation8 + $0x90] sm:$0xff]
    %v2062 = vld [vmem:[#allocation8 + $0x98] sm:$0xff]
    %v2063 = vld [vmem:[#allocation8 + $0xa0] sm:$0xff]
    %v2064 = vld [vmem:[#allocation8 + $0xa8] sm:$0xff]
    %v2065 = vld [vmem:[#allocation8 + $0xb0] sm:$0xff]
    %v2066 = vld [vmem:[#allocation8 + $0xb8] sm:$0xff]
    %v2067 = vld [vmem:[#allocation8 + $0xc0] sm:$0xff]
    %v2068 = vld [vmem:[#allocation8 + $0xc8] sm:$0xff]
    %v2069 = vld [vmem:[#allocation8 + $0xd0] sm:$0xff]
    %v2070 = vld [vmem:[#allocation8 + $0xd8] sm:$0xff]
    %v2071 = vld [vmem:[#allocation8 + $0xe0] sm:$0xff]
    %v2072 = vld [vmem:[#allocation8 + $0xe8] sm:$0xff]
    %v2073 = vld [vmem:[#allocation8 + $0xf0] sm:$0xff]
    %v2074 = vld [vmem:[#allocation8 + $0xf8] sm:$0xff]
    %v2075 = vld [vmem:[#allocation8 + $0x100] sm:$0xff]
    %v2076 = vld [vmem:[#allocation8 + $0x108] sm:$0xff]
    %v2077 = vld [vmem:[#allocation8 + $0x110] sm:$0xff]
    %v2078 = vld [vmem:[#allocation8 + $0x118] sm:$0xff]
    %v2079 = vld [vmem:[#allocation8 + $0x120] sm:$0xff]
    %v2080 = vld [vmem:[#allocation8 + $0x128] sm:$0xff]
    %v2081 = vld [vmem:[#allocation8 + $0x130] sm:$0xff]
    %v2082 = vld [vmem:[#allocation8 + $0x138] sm:$0xff]
    %v2083 = vld [vmem:[#allocation8 + $0x140] sm:$0xff]
    %v2084 = vld [vmem:[#allocation8 + $0x148] sm:$0xff]
    %v2085 = vld [vmem:[#allocation8 + $0x150] sm:$0xff]
    %v2086 = vld [vmem:[#allocation8 + $0x158] sm:$0xff]
    %v2087 = vld [vmem:[#allocation8 + $0x160] sm:$0xff]
    %v2088 = vld [vmem:[#allocation8 + $0x168] sm:$0xff]
    %v2089 = vld [vmem:[#allocation8 + $0x170] sm:$0xff]
    %v2090 = vld [vmem:[#allocation8 + $0x178] sm:$0xff]
    %2091 = vmatprep.subr.mxu0 %v2044
    %2092 = vmatpush1.msra.mxu0 %v2043
    %2093 = vmatprep.subr.mxu0 %v2047
    %2094 = vmatpush1.msra.mxu0 %v2046
    %2095 = vmatprep.subr.mxu0 %v2050
    %2096 = vmatpush1.msra.mxu0 %v2049
    %2097 = vmatprep.subr.mxu0 %v2053
    %2098 = vmatpush1.msra.mxu0 %v2052
    %2099 = vmatprep.subr.mxu0 %v2056
    %2100 = vmatpush1.msra.mxu0 %v2055
    %2101 = vmatprep.subr.mxu0 %v2059
    %2102 = vmatpush1.msra.mxu0 %v2058
    %2103 = vmatprep.subr.mxu0 %v2062
    %2104 = vmatpush1.msra.mxu0 %v2061
    %2105 = vmatprep.subr.mxu0 %v2065
    %2106 = vmatpush1.msra.mxu0 %v2064
    %2107 = vmatprep.subr.mxu0 %v2068
    %2108 = vmatpush1.msra.mxu0 %v2067
    %2109 = vmatprep.subr.mxu0 %v2071
    %2110 = vmatpush1.msra.mxu0 %v2070
    %2111 = vmatprep.subr.mxu0 %v2074
    %2112 = vmatpush1.msra.mxu0 %v2073
    %2113 = vmatprep.subr.mxu0 %v2077
    %2114 = vmatpush1.msra.mxu0 %v2076
    %2115 = vmatprep.subr.mxu0 %v2080
    %2116 = vmatpush1.msra.mxu0 %v2079
    %2117 = vmatprep.subr.mxu0 %v2083
    %2118 = vmatpush1.msra.mxu0 %v2082
    %2119 = vmatprep.subr.mxu0 %v2086
    %2120 = vmatpush1.msra.mxu0 %v2085
    %2121 = vmatprep.subr.mxu0 %v2089
    %2122 = vmatpush1.msra.mxu0 %v2088
    %2123 = vmatprep.subr.mxu0 0.0
    %2124 = vmatpush1.msra.mxu0 0.0
    %2125 = vmatprep.subr.mxu0 0.0
    %2126 = vmatpush1.msra.mxu0 0.0
    %2127 = vmatprep.subr.mxu0 0.0
    %2128 = vmatpush1.msra.mxu0 0.0
    %2129 = vmatprep.subr.mxu0 0.0
    %2130 = vmatpush1.msra.mxu0 0.0
    %2131 = vmatprep.subr.mxu0 0.0
    %2132 = vmatpush1.msra.mxu0 0.0
    %2133 = vmatprep.subr.mxu0 0.0
    %2134 = vmatpush1.msra.mxu0 0.0
    %2135 = vmatprep.subr.mxu0 0.0
    %2136 = vmatpush1.msra.mxu0 0.0
    %2137 = vmatprep.subr.mxu0 0.0
    %2138 = vmatpush1.msra.mxu0 0.0
    %2139 = vmatprep.subr.mxu0 0.0
    %2140 = vmatpush1.msra.mxu0 0.0
    %2141 = vmatprep.subr.mxu0 0.0
    %2142 = vmatpush1.msra.mxu0 0.0
    %2143 = vmatprep.subr.mxu0 0.0
    %2144 = vmatpush1.msra.mxu0 0.0
    %2145 = vmatprep.subr.mxu0 0.0
    %2146 = vmatpush1.msra.mxu0 0.0
    %2147 = vmatprep.subr.mxu0 0.0
    %2148 = vmatpush1.msra.mxu0 0.0
    %2149 = vmatprep.subr.mxu0 0.0
    %2150 = vmatpush1.msra.mxu0 0.0
    %2151 = vmatprep.subr.mxu0 0.0
    %2152 = vmatpush1.msra.mxu0 0.0
    %2153 = vmatprep.subr.mxu0 0.0
    %2154 = vmatpush1.msra.mxu0 0.0
    %2155 = vmatprep.mubr.f32.mxu0 0.0
    %2156 = vmatmul.mubr.f32.gmra.mrb[0].mxu0 %v1891
    %v2157 = vpop.f32.mrb[0].mxu0
    %v2158 = vadd.f32 0.0, %v2157
    %v2159 = vpop.f32.mrb[0].mxu0
    %v2160 = vadd.f32 0.0, %v2159
    %2161 = vdwg.mxu0
    %2162 = vmatprep.subr.mxu0 0.0
    %2163 = vmatpush1.msra.mxu0 %v2045
    %2164 = vmatprep.subr.mxu0 0.0
    %2165 = vmatpush1.msra.mxu0 %v2048
    %2166 = vmatprep.subr.mxu0 0.0
    %2167 = vmatpush1.msra.mxu0 %v2051
    %2168 = vmatprep.subr.mxu0 0.0
    %2169 = vmatpush1.msra.mxu0 %v2054
    %2170 = vmatprep.subr.mxu0 0.0
    %2171 = vmatpush1.msra.mxu0 %v2057
    %2172 = vmatprep.subr.mxu0 0.0
    %2173 = vmatpush1.msra.mxu0 %v2060
    %2174 = vmatprep.subr.mxu0 0.0
    %2175 = vmatpush1.msra.mxu0 %v2063
    %2176 = vmatprep.subr.mxu0 0.0
    %2177 = vmatpush1.msra.mxu0 %v2066
    %2178 = vmatprep.subr.mxu0 0.0
    %2179 = vmatpush1.msra.mxu0 %v2069
    %2180 = vmatprep.subr.mxu0 0.0
    %2181 = vmatpush1.msra.mxu0 %v2072
    %2182 = vmatprep.subr.mxu0 0.0
    %2183 = vmatpush1.msra.mxu0 %v2075
    %2184 = vmatprep.subr.mxu0 0.0
    %2185 = vmatpush1.msra.mxu0 %v2078
    %2186 = vmatprep.subr.mxu0 0.0
    %2187 = vmatpush1.msra.mxu0 %v2081
    %2188 = vmatprep.subr.mxu0 0.0
    %2189 = vmatpush1.msra.mxu0 %v2084
    %2190 = vmatprep.subr.mxu0 0.0
    %2191 = vmatpush1.msra.mxu0 %v2087
    %2192 = vmatprep.subr.mxu0 0.0
    %2193 = vmatpush1.msra.mxu0 %v2090
    %2194 = vmatprep.subr.mxu0 0.0
    %2195 = vmatpush1.msra.mxu0 0.0
    %2196 = vmatprep.subr.mxu0 0.0
    %2197 = vmatpush1.msra.mxu0 0.0
    %2198 = vmatprep.subr.mxu0 0.0
    %2199 = vmatpush1.msra.mxu0 0.0
    %2200 = vmatprep.subr.mxu0 0.0
    %2201 = vmatpush1.msra.mxu0 0.0
    %2202 = vmatprep.subr.mxu0 0.0
    %2203 = vmatpush1.msra.mxu0 0.0
    %2204 = vmatprep.subr.mxu0 0.0
    %2205 = vmatpush1.msra.mxu0 0.0
    %2206 = vmatprep.subr.mxu0 0.0
    %2207 = vmatpush1.msra.mxu0 0.0
    %2208 = vmatprep.subr.mxu0 0.0
    %2209 = vmatpush1.msra.mxu0 0.0
    %2210 = vmatprep.subr.mxu0 0.0
    %2211 = vmatpush1.msra.mxu0 0.0
    %2212 = vmatprep.subr.mxu0 0.0
    %2213 = vmatpush1.msra.mxu0 0.0
    %2214 = vmatprep.subr.mxu0 0.0
    %2215 = vmatpush1.msra.mxu0 0.0
    %2216 = vmatprep.subr.mxu0 0.0
    %2217 = vmatpush1.msra.mxu0 0.0
    %2218 = vmatprep.subr.mxu0 0.0
    %2219 = vmatpush1.msra.mxu0 0.0
    %2220 = vmatprep.subr.mxu0 0.0
    %2221 = vmatpush1.msra.mxu0 0.0
    %2222 = vmatprep.subr.mxu0 0.0
    %2223 = vmatpush1.msra.mxu0 0.0
    %2224 = vmatprep.subr.mxu0 0.0
    %2225 = vmatpush1.msra.mxu0 0.0
    %2226 = vmatprep.mubr.f32.mxu0 0.0
    %2227 = vmatmul.mubr.f32.gmra.mrb[0].mxu0 %v1891
    %v2228 = vpop.f32.mrb[0].mxu0
    %v2229 = vadd.f32 0.0, %v2228
    %v2230 = vpop.f32.mrb[0].mxu0
    %2231 = vdwg.mxu0
    %v2232 = vadd.f32 %v1969, %v2158
    %v2233 = vxor.u32 %v2232, 2147483648
    %v2234 = vmul.f32 %v2233, 1.442695
    %v2235 = vpow.pop %v2234
    %v2236 = vadd.f32 %v2235, 1.0
    %v2237 = vrcp.pop %v2236
    %v2238 = vmul.f32 1.0, %v2237
    %v2239 = vadd.f32 %v1971, %v2160
    %v2240 = vxor.u32 %v2239, 2147483648
    %v2241 = vmul.f32 %v2240, 1.442695
    %v2242 = vpow.pop %v2241
    %v2243 = vadd.f32 %v2242, 1.0
    %v2244 = vrcp.pop %v2243
    %v2245 = vmul.f32 1.0, %v2244
    %v2246 = vadd.f32 %v2229, %v87
    %v2247 = vmul.f32 %v2238, %v2246
    %v2248 = vadd.f32 %v2040, %v2247
    %v2249 = vtanh.pop %v2248
    %v2250 = vsub.f32 %v1891, %v2249
    %v2251 = vmul.f32 %v2245, %v2250
    %v2252 = vadd.f32 %v2249, %v2251
    %s2253 = scalar_lea.vmem [#allocation9], 20
    %2254 = vst [vmem:[%s2253] sm:$0xf] %v2252
    %2255 = vst [vmem:[#allocation2] sm:$0xf] %v2252
    // Predicated region
    $region38: #{tpu_custom_call.1} parent=1 // pred_check
      _
    $region39: #{tpu_custom_call.1} parent=1 // pred_check_branch
      %2257 = sbr.rel (0) target = $region41
    $region40: #{tpu_custom_call.1} parent=1 // pred_region
      %s2259 = ssub.s32 384, 384
      %2260 = vsyncadd [#allocation5], %s2259
      %s2261 = sshll.u32 [#allocation9], 4
      %s2262 = int_to_ptr.vmem [resolvable:$true] %s2261
      %2267 = dma.vmem_to_hbm [thread:$0]  %s2262, 384, %s5, [#allocation5], 64, 64, 4
    $region41: #{tpu_custom_call.1} parent=1 // pred_fallthru
      _
    // Predicated region
    $region42: #{tpu_custom_call.1} parent=1 // pred_check
      _
    $region43: #{tpu_custom_call.1} parent=1 // pred_check_branch
      %2269 = sbr.rel (0) target = $region45
    $region44: #{tpu_custom_call.1} parent=1 // pred_region
      %2270 = dma.done [#allocation5], 384
    $region45: #{tpu_custom_call.1} parent=1 // pred_fallthru
      _
    %2271 = vsyncpa [#allocation4], 1
    %2272 = vsyncpa [#allocation7], 1
    %2273 = vsyncpa [#allocation5], 1

</llo_original>
